<compile_context>
chip_gen: v7x
topology: tpu7x:2x2x1
jax: 0.10.0
libtpu: 0.0.40
codegen_flags: <defaults>
</compile_context>

<pallas_src>
import functools

import jax
import jax.numpy as jnp
import numpy as np
from jax import lax
from jax.experimental import pallas as pl
from jax.experimental.pallas import tpu as pltpu


_DEC_CH = 16  # last_channel_n in the PyTorch model


# ------------------------------------------------------------ in-kernel ops --

def _upsample2_matmul(x, r_ref):
    """Nearest-neighbour x2 along the length (lane) axis as one MXU matmul.

    x     : (C, L) f32, length on lanes.
    r_ref : (L, 2L) host-built 0/1 repeat matrix (matmul dtype).
    """
    r = r_ref[...]
    return jnp.dot(x.astype(r.dtype), r, preferred_element_type=jnp.float32)


def _conv1d_same(h, w_ref, b_ref, *, relu):
    """PyTorch-style 'same' Conv1d (cross-correlation) as ONE im2col matmul.

    h     : (Cin, L) f32 -- channels on sublanes, length on lanes.
    w_ref : (Cout, K*Cin), column index = t*Cin + cin (host-prepared).
    b_ref : (Cout, 1) f32.
    Returns (Cout, L) f32 (f32 accumulation; bias add + ReLU in f32 on the VPU).
    """
    cin, length = h.shape
    w = w_ref[...]
    cout, kcin = w.shape
    k = kcin // cin
    pad_lo = (k - 1) // 2
    pad_hi = k - 1 - pad_lo

    hc = h.astype(w.dtype)                       # bf16 on v6e/v7x, f32 on v5e
    pieces = []
    if pad_lo:
        pieces.append(jnp.zeros((cin, pad_lo), hc.dtype))
    pieces.append(hc)
    if pad_hi:
        pieces.append(jnp.zeros((cin, pad_hi), hc.dtype))
    h_pad = jnp.concatenate(pieces, axis=1)      # (Cin, L+K-1): one lane concat

    # im2col: K lane-shifted views stacked on the contraction (sublane) axis.
    xcol = jnp.concatenate([h_pad[:, t:t + length] for t in range(k)], axis=0)

    y = jnp.dot(w, xcol, preferred_element_type=jnp.float32) + b_ref[...]
    return jnp.maximum(y, 0.0) if relu else y


def _decoder_kernel(z_ref, wfc_ref, bfc_ref, r1_ref, w1_ref, b1_ref,
                    r2_ref, w2_ref, b2_ref, w3_ref, b3_ref, out_ref, *, l_enc):
    bi = pl.program_id(0)

    # dec_fc for this batch row: (1, latent) @ (latent, 16*L_enc), f32 accumulate.
    z = z_ref[pl.ds(bi, 1), :].astype(wfc_ref.dtype)
    fc = (jnp.dot(z, wfc_ref[...], preferred_element_type=jnp.float32)
          + bfc_ref[...])                                        # (1, 16*L_enc)

    # PyTorch's .view(16, L_enc): 16 contiguous lane slices stacked on sublanes
    # (constant count, independent of batch; out-feature order is c*L_enc + l,
    # i.e. the natural PyTorch order -- no host-side permutation needed).
    h = jnp.concatenate(
        [fc[:, c * l_enc:(c + 1) * l_enc] for c in range(_DEC_CH)], axis=0)

    h = _upsample2_matmul(h, r1_ref)                              # (16, 2*L_enc)
    h = _conv1d_same(h, w1_ref, b1_ref, relu=True)                # (32, 2*L_enc)
    h = _upsample2_matmul(h, r2_ref)                              # (32, 4*L_enc)
    h = _conv1d_same(h, w2_ref, b2_ref, relu=True)                # (16, 4*L_enc)
    h = _conv1d_same(h, w3_ref, b3_ref, relu=False)               # (C,  4*L_enc)

    out_ref[0] = h.astype(out_ref.dtype)                          # NCL, lane-dense


# ---------------------------------------------------------------- host side --

def conv_out_length(length, kernel_size, stride, padding):
    return (length + 2 * padding - kernel_size) // stride + 1


def encoder_conv_length(input_length):
    length = conv_out_length(input_length, 11, 1, 5)
    length = conv_out_length(length, 2, 2, 0)
    length = conv_out_length(length, 7, 1, 3)
    length = conv_out_length(length, 2, 2, 0)
    length = conv_out_length(length, 3, 1, 1)
    return length


def prepare_decoder_params(params, l_enc, *, matmul_dtype=jnp.float32):
    """One-time host-side rearrangement of PyTorch-layout params.

    Weights that feed the MXU are cast once to `matmul_dtype` (bf16 recommended
    on v6e / v7x); biases stay f32 because bias-add / ReLU run in f32.
    """
    wfc = params["dec_fc_w"].T.astype(matmul_dtype)              # (latent, 16*L_enc)
    bfc = params["dec_fc_b"].reshape(1, -1).astype(jnp.float32)  # (1, 16*L_enc)

    def up_matrix(length):
        # 0/1 nearest-repeat matrix: R[l, 2l] = R[l, 2l+1] = 1 (exact in bf16).
        return jnp.repeat(jnp.eye(length, dtype=jnp.float32), 2,
                          axis=1).astype(matmul_dtype)

    def conv_wb(w, b):
        cout, cin, k = w.shape
        # (Cout, Cin, K) -> (Cout, K, Cin) -> (Cout, K*Cin): column = t*Cin + cin,
        # matching the kernel's im2col sublane order.
        wk = w.transpose(0, 2, 1).reshape(cout, k * cin).astype(matmul_dtype)
        return wk, b.reshape(cout, 1).astype(jnp.float32)

    w1, b1 = conv_wb(params["conv1_w"], params["conv1_b"])
    w2, b2 = conv_wb(params["conv2_w"], params["conv2_b"])
    w3, b3 = conv_wb(params["conv3_w"], params["conv3_b"])
    return {"fc_w": wfc, "fc_b": bfc,
            "up1_r": up_matrix(l_enc), "up2_r": up_matrix(2 * l_enc),
            "conv1_w": w1, "conv1_b": b1,
            "conv2_w": w2, "conv2_b": b2,
            "conv3_w": w3, "conv3_b": b3}


def _vmem_limit_bytes(l_enc, input_channels, matmul_dtype):
    """Per-grid-step VMEM budget with headroom (v7x only has 64 MiB physical)."""
    l4 = 4 * l_enc
    itemsize = jnp.dtype(matmul_dtype).itemsize
    elems = (l4 * (16 + 32 + 32 + 16 + input_channels          # layer activations
                   + 3 * 16 + 7 * 32 + 11 * 16)                # im2col slabs
             + 2 * l_enc * l_enc + 8 * l_enc * l_enc           # repeat matrices
             + 48 * 32 + 224 * 16 + 176 * input_channels       # conv weights
             + 16 * l_enc * 16)                                # fc weight
    est = elems * (itemsize + 4)                               # matmul + f32 copies
    return int(min(48 << 20, max(16 << 20, 8 * est)))


def decoder_forward(z, kparams, l_enc, input_channels):
    """Decoder forward: z (B, latent) -> (B, C, 4*L_enc), emitted in NCL directly."""
    batch, _ = z.shape
    l_out = 4 * l_enc
    kernel = functools.partial(_decoder_kernel, l_enc=l_enc)

    def resident(arr):  # full array, constant block index -> stays VMEM-resident
        return pl.BlockSpec(arr.shape, lambda *_: (0,) * arr.ndim)

    in_order = ("fc_w", "fc_b", "up1_r", "conv1_w", "conv1_b",
                "up2_r", "conv2_w", "conv2_b", "conv3_w", "conv3_b")
    in_specs = [resident(z)] + [resident(kparams[k]) for k in in_order]
    out_specs = pl.BlockSpec((1, input_channels, l_out), lambda bi: (bi, 0, 0))

    return pl.pallas_call(
        kernel,
        out_shape=jax.ShapeDtypeStruct((batch, input_channels, l_out),
                                       jnp.float32),
        grid_spec=pltpu.PrefetchScalarGridSpec(
            num_scalar_prefetch=0, grid=(batch,),
            in_specs=in_specs, out_specs=out_specs),
        compiler_params=pltpu.CompilerParams(
            dimension_semantics=("parallel",),   # v7x: both TensorCores get work
            vmem_limit_bytes=_vmem_limit_bytes(l_enc, input_channels,
                                               kparams["fc_w"].dtype)),
    )(z, *[kparams[k] for k in in_order])


# --------------------------------------------------------------- reference ---

def decoder_reference(z, params, l_enc):
    x = z @ params["dec_fc_w"].T + params["dec_fc_b"]
    x = x.reshape(z.shape[0], _DEC_CH, l_enc)

    def conv1d(x, w, b, pad):
        y = lax.conv_general_dilated(
            x, w, window_strides=(1,), padding=[(pad, pad)],
            dimension_numbers=("NCH", "OIH", "NCH"))
        return y + b[None, :, None]

    x = jnp.repeat(x, 2, axis=2)
    x = jax.nn.relu(conv1d(x, params["conv1_w"], params["conv1_b"], 1))
    x = jnp.repeat(x, 2, axis=2)
    x = jax.nn.relu(conv1d(x, params["conv2_w"], params["conv2_b"], 3))
    x = conv1d(x, params["conv3_w"], params["conv3_b"], 5)
    return x


# -------------------------------------------------------------------- main ---

if __name__ == "__main__":
    input_channels = 8
    input_length = 16          # divisible by 4 -> decoder output length == 16
    latent_dim = 8
    batch = 2

    l_enc = encoder_conv_length(input_length)   # == 4
    flat = _DEC_CH * l_enc                      # == 64

    key = jax.random.PRNGKey(0)
    ks = jax.random.split(key, 9)
    f32 = jnp.float32
    params = {
        "dec_fc_w": jax.random.normal(ks[0], (flat, latent_dim), f32) * 0.1,
        "dec_fc_b": jax.random.normal(ks[1], (flat,), f32) * 0.1,
        "conv1_w": jax.random.normal(ks[2], (32, 16, 3), f32) * 0.1,
        "conv1_b": jax.random.normal(ks[3], (32,), f32) * 0.1,
        "conv2_w": jax.random.normal(ks[4], (16, 32, 7), f32) * 0.1,
        "conv2_b": jax.random.normal(ks[5], (16,), f32) * 0.1,
        "conv3_w": jax.random.normal(ks[6], (input_channels, 16, 11), f32) * 0.1,
        "conv3_b": jax.random.normal(ks[7], (input_channels,), f32) * 0.1,
    }
    z = jax.random.normal(ks[8], (batch, latent_dim), f32)

    ref = jax.block_until_ready(decoder_reference(z, params, l_enc))

    # f32 matmul path (v5e-friendly: all elementwise work is f32 everywhere).
    kparams = prepare_decoder_params(params, l_enc, matmul_dtype=jnp.float32)
    out = jax.block_until_ready(decoder_forward(z, kparams, l_enc, input_channels))
    assert out.shape == (batch, input_channels, input_length), out.shape
    np.testing.assert_allclose(np.asarray(out), np.asarray(ref),
                               rtol=1e-2, atol=1e-2)

    # bf16 MXU path (v6e / v7x): weights cast once host-side, f32 accumulation,
    # bias + ReLU in f32.
    kparams_bf16 = prepare_decoder_params(params, l_enc, matmul_dtype=jnp.bfloat16)
    out_bf16 = jax.block_until_ready(
        decoder_forward(z, kparams_bf16, l_enc, input_channels))
    np.testing.assert_allclose(np.asarray(out_bf16), np.asarray(ref),
                               rtol=5e-2, atol=5e-2)

    print("KERNEL_OK")
</pallas_src>

<mosaic_0001>
module attributes {stable_mosaic.version = 11 : i64} {
  func.func @_decoder_kernel(%arg0: i32, %arg1: memref<2x8xf32, #tpu.memory_space<vmem>>, %arg2: memref<8x64xf32, #tpu.memory_space<vmem>>, %arg3: memref<1x64xf32, #tpu.memory_space<vmem>>, %arg4: memref<4x8xf32, #tpu.memory_space<vmem>>, %arg5: memref<32x48xf32, #tpu.memory_space<vmem>>, %arg6: memref<32x1xf32, #tpu.memory_space<vmem>>, %arg7: memref<8x16xf32, #tpu.memory_space<vmem>>, %arg8: memref<16x224xf32, #tpu.memory_space<vmem>>, %arg9: memref<16x1xf32, #tpu.memory_space<vmem>>, %arg10: memref<8x176xf32, #tpu.memory_space<vmem>>, %arg11: memref<8x1xf32, #tpu.memory_space<vmem>>, %arg12: memref<1x8x16xf32, #tpu.memory_space<vmem>>) attributes {dimension_semantics = [#tpu.dimension_semantics<parallel>], iteration_bounds = array<i64: 2>, scalar_prefetch = 0 : i64, scratch_operands = 0 : i64, tpu.core_type = #tpu.core_type<tc>, window_params = [{pipeline_mode = #tpu.pipeline_mode<synchronous>, transform_indices = @transform_0, window_bounds = array<i64: 2, 8>}, {pipeline_mode = #tpu.pipeline_mode<synchronous>, transform_indices = @transform_1, window_bounds = array<i64: 8, 64>}, {pipeline_mode = #tpu.pipeline_mode<synchronous>, transform_indices = @transform_2, window_bounds = array<i64: 1, 64>}, {pipeline_mode = #tpu.pipeline_mode<synchronous>, transform_indices = @transform_3, window_bounds = array<i64: 4, 8>}, {pipeline_mode = #tpu.pipeline_mode<synchronous>, transform_indices = @transform_4, window_bounds = array<i64: 32, 48>}, {pipeline_mode = #tpu.pipeline_mode<synchronous>, transform_indices = @transform_5, window_bounds = array<i64: 32, 1>}, {pipeline_mode = #tpu.pipeline_mode<synchronous>, transform_indices = @transform_6, window_bounds = array<i64: 8, 16>}, {pipeline_mode = #tpu.pipeline_mode<synchronous>, transform_indices = @transform_7, window_bounds = array<i64: 16, 224>}, {pipeline_mode = #tpu.pipeline_mode<synchronous>, transform_indices = @transform_8, window_bounds = array<i64: 16, 1>}, {pipeline_mode = #tpu.pipeline_mode<synchronous>, transform_indices = @transform_9, window_bounds = array<i64: 8, 176>}, {pipeline_mode = #tpu.pipeline_mode<synchronous>, transform_indices = @transform_10, window_bounds = array<i64: 8, 1>}, {transform_indices = @transform_11, window_bounds = array<i64: 1, 8, 16>}]} {
    %0 = arith.index_cast %arg0 : i32 to index
    %c0 = arith.constant 0 : index
    %1 = vector.load %arg1[%0, %c0] : memref<2x8xf32, #tpu.memory_space<vmem>>, vector<1x8xf32>
    %c0_0 = arith.constant 0 : index
    %c0_1 = arith.constant 0 : index
    %2 = vector.load %arg2[%c0_0, %c0_1] : memref<8x64xf32, #tpu.memory_space<vmem>>, vector<8x64xf32>
    %cst = arith.constant dense<0.000000e+00> : vector<1x64xf32>
    %3 = tpu.matmul %1, %2, %cst {dimension_numbers = #tpu.dot_dimension_numbers<[1], [0], [0], [1], [0, 0, 1, 1], [], []>} : vector<1x8xf32>, vector<8x64xf32>, vector<1x64xf32> -> vector<1x64xf32>
    %c0_2 = arith.constant 0 : index
    %c0_3 = arith.constant 0 : index
    %4 = vector.load %arg3[%c0_2, %c0_3] : memref<1x64xf32, #tpu.memory_space<vmem>>, vector<1x64xf32>
    %5 = arith.addf %3, %4 : vector<1x64xf32>
    %6 = vector.extract_strided_slice %5 {offsets = [0, 0], sizes = [1, 4], strides = [1, 1]} : vector<1x64xf32> to vector<1x4xf32>
    %7 = vector.extract_strided_slice %5 {offsets = [0, 4], sizes = [1, 4], strides = [1, 1]} : vector<1x64xf32> to vector<1x4xf32>
    %8 = vector.extract_strided_slice %5 {offsets = [0, 8], sizes = [1, 4], strides = [1, 1]} : vector<1x64xf32> to vector<1x4xf32>
    %9 = vector.extract_strided_slice %5 {offsets = [0, 12], sizes = [1, 4], strides = [1, 1]} : vector<1x64xf32> to vector<1x4xf32>
    %10 = vector.extract_strided_slice %5 {offsets = [0, 16], sizes = [1, 4], strides = [1, 1]} : vector<1x64xf32> to vector<1x4xf32>
    %11 = vector.extract_strided_slice %5 {offsets = [0, 20], sizes = [1, 4], strides = [1, 1]} : vector<1x64xf32> to vector<1x4xf32>
    %12 = vector.extract_strided_slice %5 {offsets = [0, 24], sizes = [1, 4], strides = [1, 1]} : vector<1x64xf32> to vector<1x4xf32>
    %13 = vector.extract_strided_slice %5 {offsets = [0, 28], sizes = [1, 4], strides = [1, 1]} : vector<1x64xf32> to vector<1x4xf32>
    %14 = vector.extract_strided_slice %5 {offsets = [0, 32], sizes = [1, 4], strides = [1, 1]} : vector<1x64xf32> to vector<1x4xf32>
    %15 = vector.extract_strided_slice %5 {offsets = [0, 36], sizes = [1, 4], strides = [1, 1]} : vector<1x64xf32> to vector<1x4xf32>
    %16 = vector.extract_strided_slice %5 {offsets = [0, 40], sizes = [1, 4], strides = [1, 1]} : vector<1x64xf32> to vector<1x4xf32>
    %17 = vector.extract_strided_slice %5 {offsets = [0, 44], sizes = [1, 4], strides = [1, 1]} : vector<1x64xf32> to vector<1x4xf32>
    %18 = vector.extract_strided_slice %5 {offsets = [0, 48], sizes = [1, 4], strides = [1, 1]} : vector<1x64xf32> to vector<1x4xf32>
    %19 = vector.extract_strided_slice %5 {offsets = [0, 52], sizes = [1, 4], strides = [1, 1]} : vector<1x64xf32> to vector<1x4xf32>
    %20 = vector.extract_strided_slice %5 {offsets = [0, 56], sizes = [1, 4], strides = [1, 1]} : vector<1x64xf32> to vector<1x4xf32>
    %21 = vector.extract_strided_slice %5 {offsets = [0, 60], sizes = [1, 4], strides = [1, 1]} : vector<1x64xf32> to vector<1x4xf32>
    %22 = tpu.concatenate %6, %7, %8, %9, %10, %11, %12, %13, %14, %15, %16, %17, %18, %19, %20, %21 in 0 : vector<1x4xf32>, vector<1x4xf32>, vector<1x4xf32>, vector<1x4xf32>, vector<1x4xf32>, vector<1x4xf32>, vector<1x4xf32>, vector<1x4xf32>, vector<1x4xf32>, vector<1x4xf32>, vector<1x4xf32>, vector<1x4xf32>, vector<1x4xf32>, vector<1x4xf32>, vector<1x4xf32>, vector<1x4xf32> -> vector<16x4xf32>
    %c0_4 = arith.constant 0 : index
    %c0_5 = arith.constant 0 : index
    %23 = vector.load %arg4[%c0_4, %c0_5] : memref<4x8xf32, #tpu.memory_space<vmem>>, vector<4x8xf32>
    %cst_6 = arith.constant dense<0.000000e+00> : vector<16x8xf32>
    %24 = tpu.matmul %22, %23, %cst_6 {dimension_numbers = #tpu.dot_dimension_numbers<[1], [0], [0], [1], [0, 0, 1, 1], [], []>} : vector<16x4xf32>, vector<4x8xf32>, vector<16x8xf32> -> vector<16x8xf32>
    %c0_7 = arith.constant 0 : index
    %c0_8 = arith.constant 0 : index
    %25 = vector.load %arg5[%c0_7, %c0_8] : memref<32x48xf32, #tpu.memory_space<vmem>>, vector<32x48xf32>
    %cst_9 = arith.constant 0.000000e+00 : f32
    %26 = vector.broadcast %cst_9 : f32 to vector<16x1xf32>
    %cst_10 = arith.constant 0.000000e+00 : f32
    %27 = vector.broadcast %cst_10 : f32 to vector<16x1xf32>
    %28 = tpu.concatenate %26, %24, %27 in 1 : vector<16x1xf32>, vector<16x8xf32>, vector<16x1xf32> -> vector<16x10xf32>
    %29 = vector.extract_strided_slice %28 {offsets = [0, 0], sizes = [16, 8], strides = [1, 1]} : vector<16x10xf32> to vector<16x8xf32>
    %30 = vector.extract_strided_slice %28 {offsets = [0, 1], sizes = [16, 8], strides = [1, 1]} : vector<16x10xf32> to vector<16x8xf32>
    %31 = vector.extract_strided_slice %28 {offsets = [0, 2], sizes = [16, 8], strides = [1, 1]} : vector<16x10xf32> to vector<16x8xf32>
    %32 = tpu.concatenate %29, %30, %31 in 0 : vector<16x8xf32>, vector<16x8xf32>, vector<16x8xf32> -> vector<48x8xf32>
    %cst_11 = arith.constant dense<0.000000e+00> : vector<32x8xf32>
    %33 = tpu.matmul %25, %32, %cst_11 {dimension_numbers = #tpu.dot_dimension_numbers<[1], [0], [0], [1], [0, 0, 1, 1], [], []>} : vector<32x48xf32>, vector<48x8xf32>, vector<32x8xf32> -> vector<32x8xf32>
    %c0_12 = arith.constant 0 : index
    %c0_13 = arith.constant 0 : index
    %34 = vector.load %arg6[%c0_12, %c0_13] : memref<32x1xf32, #tpu.memory_space<vmem>>, vector<32x1xf32>
    %35 = vector.broadcast %34 : vector<32x1xf32> to vector<32x8xf32>
    %36 = arith.addf %33, %35 : vector<32x8xf32>
    %cst_14 = arith.constant 0.000000e+00 : f32
    %37 = vector.broadcast %cst_14 : f32 to vector<32x8xf32>
    %38 = arith.maximumf %36, %37 : vector<32x8xf32>
    %c0_15 = arith.constant 0 : index
    %c0_16 = arith.constant 0 : index
    %39 = vector.load %arg7[%c0_15, %c0_16] : memref<8x16xf32, #tpu.memory_space<vmem>>, vector<8x16xf32>
    %cst_17 = arith.constant dense<0.000000e+00> : vector<32x16xf32>
    %40 = tpu.matmul %38, %39, %cst_17 {dimension_numbers = #tpu.dot_dimension_numbers<[1], [0], [0], [1], [0, 0, 1, 1], [], []>} : vector<32x8xf32>, vector<8x16xf32>, vector<32x16xf32> -> vector<32x16xf32>
    %c0_18 = arith.constant 0 : index
    %c0_19 = arith.constant 0 : index
    %41 = vector.load %arg8[%c0_18, %c0_19] : memref<16x224xf32, #tpu.memory_space<vmem>>, vector<16x224xf32>
    %cst_20 = arith.constant 0.000000e+00 : f32
    %42 = vector.broadcast %cst_20 : f32 to vector<32x3xf32>
    %cst_21 = arith.constant 0.000000e+00 : f32
    %43 = vector.broadcast %cst_21 : f32 to vector<32x3xf32>
    %44 = tpu.concatenate %42, %40, %43 in 1 : vector<32x3xf32>, vector<32x16xf32>, vector<32x3xf32> -> vector<32x22xf32>
    %45 = vector.extract_strided_slice %44 {offsets = [0, 0], sizes = [32, 16], strides = [1, 1]} : vector<32x22xf32> to vector<32x16xf32>
    %46 = vector.extract_strided_slice %44 {offsets = [0, 1], sizes = [32, 16], strides = [1, 1]} : vector<32x22xf32> to vector<32x16xf32>
    %47 = vector.extract_strided_slice %44 {offsets = [0, 2], sizes = [32, 16], strides = [1, 1]} : vector<32x22xf32> to vector<32x16xf32>
    %48 = vector.extract_strided_slice %44 {offsets = [0, 3], sizes = [32, 16], strides = [1, 1]} : vector<32x22xf32> to vector<32x16xf32>
    %49 = vector.extract_strided_slice %44 {offsets = [0, 4], sizes = [32, 16], strides = [1, 1]} : vector<32x22xf32> to vector<32x16xf32>
    %50 = vector.extract_strided_slice %44 {offsets = [0, 5], sizes = [32, 16], strides = [1, 1]} : vector<32x22xf32> to vector<32x16xf32>
    %51 = vector.extract_strided_slice %44 {offsets = [0, 6], sizes = [32, 16], strides = [1, 1]} : vector<32x22xf32> to vector<32x16xf32>
    %52 = tpu.concatenate %45, %46, %47, %48, %49, %50, %51 in 0 : vector<32x16xf32>, vector<32x16xf32>, vector<32x16xf32>, vector<32x16xf32>, vector<32x16xf32>, vector<32x16xf32>, vector<32x16xf32> -> vector<224x16xf32>
    %cst_22 = arith.constant dense<0.000000e+00> : vector<16x16xf32>
    %53 = tpu.matmul %41, %52, %cst_22 {dimension_numbers = #tpu.dot_dimension_numbers<[1], [0], [0], [1], [0, 0, 1, 1], [], []>} : vector<16x224xf32>, vector<224x16xf32>, vector<16x16xf32> -> vector<16x16xf32>
    %c0_23 = arith.constant 0 : index
    %c0_24 = arith.constant 0 : index
    %54 = vector.load %arg9[%c0_23, %c0_24] : memref<16x1xf32, #tpu.memory_space<vmem>>, vector<16x1xf32>
    %55 = vector.broadcast %54 : vector<16x1xf32> to vector<16x16xf32>
    %56 = arith.addf %53, %55 : vector<16x16xf32>
    %cst_25 = arith.constant 0.000000e+00 : f32
    %57 = vector.broadcast %cst_25 : f32 to vector<16x16xf32>
    %58 = arith.maximumf %56, %57 : vector<16x16xf32>
    %c0_26 = arith.constant 0 : index
    %c0_27 = arith.constant 0 : index
    %59 = vector.load %arg10[%c0_26, %c0_27] : memref<8x176xf32, #tpu.memory_space<vmem>>, vector<8x176xf32>
    %cst_28 = arith.constant 0.000000e+00 : f32
    %60 = vector.broadcast %cst_28 : f32 to vector<16x5xf32>
    %cst_29 = arith.constant 0.000000e+00 : f32
    %61 = vector.broadcast %cst_29 : f32 to vector<16x5xf32>
    %62 = tpu.concatenate %60, %58, %61 in 1 : vector<16x5xf32>, vector<16x16xf32>, vector<16x5xf32> -> vector<16x26xf32>
    %63 = vector.extract_strided_slice %62 {offsets = [0, 0], sizes = [16, 16], strides = [1, 1]} : vector<16x26xf32> to vector<16x16xf32>
    %64 = vector.extract_strided_slice %62 {offsets = [0, 1], sizes = [16, 16], strides = [1, 1]} : vector<16x26xf32> to vector<16x16xf32>
    %65 = vector.extract_strided_slice %62 {offsets = [0, 2], sizes = [16, 16], strides = [1, 1]} : vector<16x26xf32> to vector<16x16xf32>
    %66 = vector.extract_strided_slice %62 {offsets = [0, 3], sizes = [16, 16], strides = [1, 1]} : vector<16x26xf32> to vector<16x16xf32>
    %67 = vector.extract_strided_slice %62 {offsets = [0, 4], sizes = [16, 16], strides = [1, 1]} : vector<16x26xf32> to vector<16x16xf32>
    %68 = vector.extract_strided_slice %62 {offsets = [0, 5], sizes = [16, 16], strides = [1, 1]} : vector<16x26xf32> to vector<16x16xf32>
    %69 = vector.extract_strided_slice %62 {offsets = [0, 6], sizes = [16, 16], strides = [1, 1]} : vector<16x26xf32> to vector<16x16xf32>
    %70 = vector.extract_strided_slice %62 {offsets = [0, 7], sizes = [16, 16], strides = [1, 1]} : vector<16x26xf32> to vector<16x16xf32>
    %71 = vector.extract_strided_slice %62 {offsets = [0, 8], sizes = [16, 16], strides = [1, 1]} : vector<16x26xf32> to vector<16x16xf32>
    %72 = vector.extract_strided_slice %62 {offsets = [0, 9], sizes = [16, 16], strides = [1, 1]} : vector<16x26xf32> to vector<16x16xf32>
    %73 = vector.extract_strided_slice %62 {offsets = [0, 10], sizes = [16, 16], strides = [1, 1]} : vector<16x26xf32> to vector<16x16xf32>
    %74 = tpu.concatenate %63, %64, %65, %66, %67, %68, %69, %70, %71, %72, %73 in 0 : vector<16x16xf32>, vector<16x16xf32>, vector<16x16xf32>, vector<16x16xf32>, vector<16x16xf32>, vector<16x16xf32>, vector<16x16xf32>, vector<16x16xf32>, vector<16x16xf32>, vector<16x16xf32>, vector<16x16xf32> -> vector<176x16xf32>
    %cst_30 = arith.constant dense<0.000000e+00> : vector<8x16xf32>
    %75 = tpu.matmul %59, %74, %cst_30 {dimension_numbers = #tpu.dot_dimension_numbers<[1], [0], [0], [1], [0, 0, 1, 1], [], []>} : vector<8x176xf32>, vector<176x16xf32>, vector<8x16xf32> -> vector<8x16xf32>
    %c0_31 = arith.constant 0 : index
    %c0_32 = arith.constant 0 : index
    %76 = vector.load %arg11[%c0_31, %c0_32] : memref<8x1xf32, #tpu.memory_space<vmem>>, vector<8x1xf32>
    %77 = vector.broadcast %76 : vector<8x1xf32> to vector<8x16xf32>
    %78 = arith.addf %75, %77 : vector<8x16xf32>
    %c0_33 = arith.constant 0 : index
    %c0_34 = arith.constant 0 : index
    %c0_35 = arith.constant 0 : index
    %79 = vector.load %arg12[%c0_33, %c0_34, %c0_35] : memref<1x8x16xf32, #tpu.memory_space<vmem>>, vector<1x8x16xf32>
    %80 = vector.shape_cast %79 : vector<1x8x16xf32> to vector<8x16xf32>
    %81 = vector.shape_cast %78 : vector<8x16xf32> to vector<1x8x16xf32>
    tpu.vector_store %arg12[%c0_33, %c0_34, %c0_35], %81 {strides = array<i32>} : memref<1x8x16xf32, #tpu.memory_space<vmem>>, vector<1x8x16xf32>,
    return
  }
  func.func @transform_0(%arg0: i32) -> (i32, i32) {
    %c0_i32 = arith.constant 0 : i32
    %c0_i32_0 = arith.constant 0 : i32
    %c0_i32_1 = arith.constant 0 : i32
    return %c0_i32, %c0_i32_0 : i32, i32
  }
  func.func @transform_1(%arg0: i32) -> (i32, i32) {
    %c0_i32 = arith.constant 0 : i32
    %c0_i32_0 = arith.constant 0 : i32
    %c0_i32_1 = arith.constant 0 : i32
    return %c0_i32, %c0_i32_0 : i32, i32
  }
  func.func @transform_2(%arg0: i32) -> (i32, i32) {
    %c0_i32 = arith.constant 0 : i32
    %c0_i32_0 = arith.constant 0 : i32
    %c0_i32_1 = arith.constant 0 : i32
    return %c0_i32, %c0_i32_0 : i32, i32
  }
  func.func @transform_3(%arg0: i32) -> (i32, i32) {
    %c0_i32 = arith.constant 0 : i32
    %c0_i32_0 = arith.constant 0 : i32
    %c0_i32_1 = arith.constant 0 : i32
    return %c0_i32, %c0_i32_0 : i32, i32
  }
  func.func @transform_4(%arg0: i32) -> (i32, i32) {
    %c0_i32 = arith.constant 0 : i32
    %c0_i32_0 = arith.constant 0 : i32
    %c0_i32_1 = arith.constant 0 : i32
    return %c0_i32, %c0_i32_0 : i32, i32
  }
  func.func @transform_5(%arg0: i32) -> (i32, i32) {
    %c0_i32 = arith.constant 0 : i32
    %c0_i32_0 = arith.constant 0 : i32
    %c0_i32_1 = arith.constant 0 : i32
    return %c0_i32, %c0_i32_0 : i32, i32
  }
  func.func @transform_6(%arg0: i32) -> (i32, i32) {
    %c0_i32 = arith.constant 0 : i32
    %c0_i32_0 = arith.constant 0 : i32
    %c0_i32_1 = arith.constant 0 : i32
    return %c0_i32, %c0_i32_0 : i32, i32
  }
  func.func @transform_7(%arg0: i32) -> (i32, i32) {
    %c0_i32 = arith.constant 0 : i32
    %c0_i32_0 = arith.constant 0 : i32
    %c0_i32_1 = arith.constant 0 : i32
    return %c0_i32, %c0_i32_0 : i32, i32
  }
  func.func @transform_8(%arg0: i32) -> (i32, i32) {
    %c0_i32 = arith.constant 0 : i32
    %c0_i32_0 = arith.constant 0 : i32
    %c0_i32_1 = arith.constant 0 : i32
    return %c0_i32, %c0_i32_0 : i32, i32
  }
  func.func @transform_9(%arg0: i32) -> (i32, i32) {
    %c0_i32 = arith.constant 0 : i32
    %c0_i32_0 = arith.constant 0 : i32
    %c0_i32_1 = arith.constant 0 : i32
    return %c0_i32, %c0_i32_0 : i32, i32
  }
  func.func @transform_10(%arg0: i32) -> (i32, i32) {
    %c0_i32 = arith.constant 0 : i32
    %c0_i32_0 = arith.constant 0 : i32
    %c0_i32_1 = arith.constant 0 : i32
    return %c0_i32, %c0_i32_0 : i32, i32
  }
  func.func @transform_11(%arg0: i32) -> (i32, i32, i32) {
    %c0_i32 = arith.constant 0 : i32
    %c0_i32_0 = arith.constant 0 : i32
    %c0_i32_1 = arith.constant 0 : i32
    return %arg0, %c0_i32, %c0_i32_0 : i32, i32, i32
  }
}

</mosaic_0001>

<llo_original>
// kernel: tpu_custom_call.1
$region0: #{tpu_custom_call.1}
  #allocation0 [shape = 'u32[]', space=smem, size = 0x4, offset = 0x4, fixed_abs, tag = 'smem constant byte address 0x4 - core index']
  #allocation1 [shape = 'u32[144,128]{1,0:T(1,128)}', space=vmem, size = 0x12000, scoped, tag = 'internal scratch']
  %s0 = inlined_call_operand.hbm [shape: f32[2,8], index: 0, kind: input, shape index: {}]
  %s1 = inlined_call_operand.hbm [shape: f32[8,64], index: 1, kind: input, shape index: {}]
  %s2 = inlined_call_operand.vmem [shape: f32[1,64], index: 2, kind: input, shape index: {}]
  %s3 = inlined_call_operand.hbm [shape: f32[4,8], index: 3, kind: input, shape index: {}]
  %s4 = inlined_call_operand.vmem [shape: f32[32,48], index: 4, kind: input, shape index: {}]
  %s5 = inlined_call_operand.vmem [shape: f32[32,1], index: 5, kind: input, shape index: {}]
  %s6 = inlined_call_operand.hbm [shape: f32[8,16], index: 6, kind: input, shape index: {}]
  %s7 = inlined_call_operand.vmem [shape: f32[16,224], index: 7, kind: input, shape index: {}]
  %s8 = inlined_call_operand.vmem [shape: f32[16,1], index: 8, kind: input, shape index: {}]
  %s9 = inlined_call_operand.vmem [shape: f32[8,176], index: 9, kind: input, shape index: {}]
  %s10 = inlined_call_operand.vmem [shape: f32[8,1], index: 10, kind: input, shape index: {}]
  %s11 = inlined_call_operand.hbm [shape: f32[2,8,16], index: 11, kind: output, shape index: {}]
  %s12 = sld [smem:[#allocation0]]
  $region93: #{tpu_custom_call.1} parent=0
    _
  %s14 = ssub.s32 1, %s12
  %s15 = scalar_select 0, %s14, %s12
  $region1: #{tpu_custom_call.1} parent=0
    #allocation2 [shape = 'u8[1024]{0}', space=vmem, size = 0x400, scoped, tag = 'input window, operand 0, single buffered']
    #allocation3 [shape = 's32[2]{0}', space=sflag, size = 0x8, scoped, tag = 'scoped memory for tpu_custom_call.1']
    #allocation4 [shape = 's32[2]{0}', space=sflag, size = 0x8, scoped, tag = 'scoped memory for tpu_custom_call.1']
    #allocation5 [shape = 'u8[4096]{0}', space=vmem, size = 0x1000, scoped, tag = 'input window, operand 1, single buffered']
    #allocation6 [shape = 's32[1]{0}', space=sflag, size = 0x4, scoped, tag = 'scoped memory for tpu_custom_call.1']
    #allocation7 [shape = 'u8[2048]{0}', space=vmem, size = 0x800, scoped, tag = 'input window, operand 3, single buffered']
    #allocation8 [shape = 'u8[4096]{0}', space=vmem, size = 0x1000, scoped, tag = 'input window, operand 6, single buffered']
    #allocation9 [shape = 's32[1]{0}', space=sflag, size = 0x4, scoped, tag = 'scoped memory for tpu_custom_call.1']
    #allocation10 [shape = 'u8[8192]{0}', space=vmem, size = 0x2000, scoped, tag = 'output window, operand 0']
    %16 = vsyncpa [#allocation3], 0
    %17 = vsyncpa [#allocation6], 0
    %18 = vsyncpa [#allocation9], 0
    %19 = vsyncpa [#allocation4], 0
    %s20 = scalar_lea.sflag [#allocation4], 1
    %21 = vsyncpa %s20, 0
    loop: start=0, step=1, limit=4
    $region2: #{tpu_custom_call.1} parent=1 // loop_pre_header
      _
    $region3: #{tpu_custom_call.1} parent=1 // loop_header
      %s23 = sphi 0, %s27
      %p24 = scmp.ge.s32.totalorder %s23, 4
      %s31 = sphi 0, %s31
      %s33 = sphi 0, %s31
      %s34 = sphi 0, %s33
      %s48 = sphi 0, %s34
      %s52 = sphi 0, %s52
      %s54 = sphi 0, %s52
      %s55 = sphi 0, %s54
      %s69 = sphi 0, %s55
      %s73 = sphi 0, %s73
      %s75 = sphi 0, %s73
      %s76 = sphi 0, %s75
      %s90 = sphi 0, %s76
      %s94 = sphi 0, %s94
      %s96 = sphi 0, %s94
      %s97 = sphi 0, %s96
      %s111 = sphi 0, %s97
      %s115 = sphi 0, %s115
      %s117 = sphi 0, %s115
      %s118 = sphi 0, %s117
      %s132 = sphi 0, %s118
      %s136 = sphi 0, %s136
      %s138 = sphi 0, %s136
      %s139 = sphi 0, %s138
      %s153 = sphi 0, %s139
      %s157 = sphi 0, %s157
      %s159 = sphi 0, %s157
      %s160 = sphi 0, %s159
      %s174 = sphi 0, %s160
      %s178 = sphi 0, %s178
      %s180 = sphi 0, %s178
      %s181 = sphi 0, %s180
      %s195 = sphi 0, %s181
      %s199 = sphi 0, %s199
      %s201 = sphi 0, %s199
      %s202 = sphi 0, %s201
      %s216 = sphi 0, %s202
      %s220 = sphi 0, %s220
      %s222 = sphi 0, %s220
      %s223 = sphi 0, %s222
      %s237 = sphi 0, %s223
      %s241 = sphi 0, %s241
      %s243 = sphi 0, %s241
      %s244 = sphi 0, %s243
      %s258 = sphi 0, %s244
      %s264 = sphi 0, %s266
      %s267 = sphi 0, %s264
      %s268 = sphi 0, %s267
      %s284 = sphi 0, %s268
    $region4: #{tpu_custom_call.1} parent=1 // loop_header_branch
      %26 = sbr.rel (%p24) target = $region8
    $region5: #{tpu_custom_call.1} parent=1 // loop_body
      %s28 = ssub.s32 %s23, 1
      %s29 = ssub.s32 %s23, 2
      %s30 = sadd.s32 %s23, 1
      %s32 = sadd.s32 %s31, 1
      %p35 = scmp.eq.s32.totalorder %s23, 1
      %p36 = scmp.ne.s32.totalorder %s31, %s33
      %p37 = scmp.eq.s32.totalorder %s23, 0
      %p38 = por %p36, %p37
      %p39 = scmp.ne.s32.totalorder %s31, %s33
      %p40 = scmp.eq.s32.totalorder %s28, 1
      %p41 = por %p39, %p40
      %p42 = scmp.ne.s32.totalorder %s33, %s34
      %p43 = scmp.eq.s32.totalorder %s28, 0
      %p44 = por %p42, %p43
      %p45 = scmp.ne.s32.totalorder %s33, %s34
      %p46 = scmp.eq.s32.totalorder %s29, 1
      %p47 = por %p45, %p46
      %p49 = scmp.ne.s32.totalorder %s34, %s48
      %p50 = scmp.eq.s32.totalorder %s29, 0
      %p51 = por %p49, %p50
      %s53 = sadd.s32 %s52, 1
      %p56 = scmp.eq.s32.totalorder %s23, 1
      %p57 = scmp.ne.s32.totalorder %s52, %s54
      %p58 = scmp.eq.s32.totalorder %s23, 0
      %p59 = por %p57, %p58
      %p60 = scmp.ne.s32.totalorder %s52, %s54
      %p61 = scmp.eq.s32.totalorder %s28, 1
      %p62 = por %p60, %p61
      %p63 = scmp.ne.s32.totalorder %s54, %s55
      %p64 = scmp.eq.s32.totalorder %s28, 0
      %p65 = por %p63, %p64
      %p66 = scmp.ne.s32.totalorder %s54, %s55
      %p67 = scmp.eq.s32.totalorder %s29, 1
      %p68 = por %p66, %p67
      %p70 = scmp.ne.s32.totalorder %s55, %s69
      %p71 = scmp.eq.s32.totalorder %s29, 0
      %p72 = por %p70, %p71
      %s74 = sadd.s32 %s73, 1
      %p77 = scmp.eq.s32.totalorder %s23, 1
      %p78 = scmp.ne.s32.totalorder %s73, %s75
      %p79 = scmp.eq.s32.totalorder %s23, 0
      %p80 = por %p78, %p79
      %p81 = scmp.ne.s32.totalorder %s73, %s75
      %p82 = scmp.eq.s32.totalorder %s28, 1
      %p83 = por %p81, %p82
      %p84 = scmp.ne.s32.totalorder %s75, %s76
      %p85 = scmp.eq.s32.totalorder %s28, 0
      %p86 = por %p84, %p85
      %p87 = scmp.ne.s32.totalorder %s75, %s76
      %p88 = scmp.eq.s32.totalorder %s29, 1
      %p89 = por %p87, %p88
      %p91 = scmp.ne.s32.totalorder %s76, %s90
      %p92 = scmp.eq.s32.totalorder %s29, 0
      %p93 = por %p91, %p92
      %s95 = sadd.s32 %s94, 1
      %p98 = scmp.eq.s32.totalorder %s23, 1
      %p99 = scmp.ne.s32.totalorder %s94, %s96
      %p100 = scmp.eq.s32.totalorder %s23, 0
      %p101 = por %p99, %p100
      %p102 = scmp.ne.s32.totalorder %s94, %s96
      %p103 = scmp.eq.s32.totalorder %s28, 1
      %p104 = por %p102, %p103
      %p105 = scmp.ne.s32.totalorder %s96, %s97
      %p106 = scmp.eq.s32.totalorder %s28, 0
      %p107 = por %p105, %p106
      %p108 = scmp.ne.s32.totalorder %s96, %s97
      %p109 = scmp.eq.s32.totalorder %s29, 1
      %p110 = por %p108, %p109
      %p112 = scmp.ne.s32.totalorder %s97, %s111
      %p113 = scmp.eq.s32.totalorder %s29, 0
      %p114 = por %p112, %p113
      %s116 = sadd.s32 %s115, 1
      %p119 = scmp.eq.s32.totalorder %s23, 1
      %p120 = scmp.ne.s32.totalorder %s115, %s117
      %p121 = scmp.eq.s32.totalorder %s23, 0
      %p122 = por %p120, %p121
      %p123 = scmp.ne.s32.totalorder %s115, %s117
      %p124 = scmp.eq.s32.totalorder %s28, 1
      %p125 = por %p123, %p124
      %p126 = scmp.ne.s32.totalorder %s117, %s118
      %p127 = scmp.eq.s32.totalorder %s28, 0
      %p128 = por %p126, %p127
      %p129 = scmp.ne.s32.totalorder %s117, %s118
      %p130 = scmp.eq.s32.totalorder %s29, 1
      %p131 = por %p129, %p130
      %p133 = scmp.ne.s32.totalorder %s118, %s132
      %p134 = scmp.eq.s32.totalorder %s29, 0
      %p135 = por %p133, %p134
      %s137 = sadd.s32 %s136, 1
      %p140 = scmp.eq.s32.totalorder %s23, 1
      %p141 = scmp.ne.s32.totalorder %s136, %s138
      %p142 = scmp.eq.s32.totalorder %s23, 0
      %p143 = por %p141, %p142
      %p144 = scmp.ne.s32.totalorder %s136, %s138
      %p145 = scmp.eq.s32.totalorder %s28, 1
      %p146 = por %p144, %p145
      %p147 = scmp.ne.s32.totalorder %s138, %s139
      %p148 = scmp.eq.s32.totalorder %s28, 0
      %p149 = por %p147, %p148
      %p150 = scmp.ne.s32.totalorder %s138, %s139
      %p151 = scmp.eq.s32.totalorder %s29, 1
      %p152 = por %p150, %p151
      %p154 = scmp.ne.s32.totalorder %s139, %s153
      %p155 = scmp.eq.s32.totalorder %s29, 0
      %p156 = por %p154, %p155
      %s158 = sadd.s32 %s157, 1
      %p161 = scmp.eq.s32.totalorder %s23, 1
      %p162 = scmp.ne.s32.totalorder %s157, %s159
      %p163 = scmp.eq.s32.totalorder %s23, 0
      %p164 = por %p162, %p163
      %p165 = scmp.ne.s32.totalorder %s157, %s159
      %p166 = scmp.eq.s32.totalorder %s28, 1
      %p167 = por %p165, %p166
      %p168 = scmp.ne.s32.totalorder %s159, %s160
      %p169 = scmp.eq.s32.totalorder %s28, 0
      %p170 = por %p168, %p169
      %p171 = scmp.ne.s32.totalorder %s159, %s160
      %p172 = scmp.eq.s32.totalorder %s29, 1
      %p173 = por %p171, %p172
      %p175 = scmp.ne.s32.totalorder %s160, %s174
      %p176 = scmp.eq.s32.totalorder %s29, 0
      %p177 = por %p175, %p176
      %s179 = sadd.s32 %s178, 1
      %p182 = scmp.eq.s32.totalorder %s23, 1
      %p183 = scmp.ne.s32.totalorder %s178, %s180
      %p184 = scmp.eq.s32.totalorder %s23, 0
      %p185 = por %p183, %p184
      %p186 = scmp.ne.s32.totalorder %s178, %s180
      %p187 = scmp.eq.s32.totalorder %s28, 1
      %p188 = por %p186, %p187
      %p189 = scmp.ne.s32.totalorder %s180, %s181
      %p190 = scmp.eq.s32.totalorder %s28, 0
      %p191 = por %p189, %p190
      %p192 = scmp.ne.s32.totalorder %s180, %s181
      %p193 = scmp.eq.s32.totalorder %s29, 1
      %p194 = por %p192, %p193
      %p196 = scmp.ne.s32.totalorder %s181, %s195
      %p197 = scmp.eq.s32.totalorder %s29, 0
      %p198 = por %p196, %p197
      %s200 = sadd.s32 %s199, 1
      %p203 = scmp.eq.s32.totalorder %s23, 1
      %p204 = scmp.ne.s32.totalorder %s199, %s201
      %p205 = scmp.eq.s32.totalorder %s23, 0
      %p206 = por %p204, %p205
      %p207 = scmp.ne.s32.totalorder %s199, %s201
      %p208 = scmp.eq.s32.totalorder %s28, 1
      %p209 = por %p207, %p208
      %p210 = scmp.ne.s32.totalorder %s201, %s202
      %p211 = scmp.eq.s32.totalorder %s28, 0
      %p212 = por %p210, %p211
      %p213 = scmp.ne.s32.totalorder %s201, %s202
      %p214 = scmp.eq.s32.totalorder %s29, 1
      %p215 = por %p213, %p214
      %p217 = scmp.ne.s32.totalorder %s202, %s216
      %p218 = scmp.eq.s32.totalorder %s29, 0
      %p219 = por %p217, %p218
      %s221 = sadd.s32 %s220, 1
      %p224 = scmp.eq.s32.totalorder %s23, 1
      %p225 = scmp.ne.s32.totalorder %s220, %s222
      %p226 = scmp.eq.s32.totalorder %s23, 0
      %p227 = por %p225, %p226
      %p228 = scmp.ne.s32.totalorder %s220, %s222
      %p229 = scmp.eq.s32.totalorder %s28, 1
      %p230 = por %p228, %p229
      %p231 = scmp.ne.s32.totalorder %s222, %s223
      %p232 = scmp.eq.s32.totalorder %s28, 0
      %p233 = por %p231, %p232
      %p234 = scmp.ne.s32.totalorder %s222, %s223
      %p235 = scmp.eq.s32.totalorder %s29, 1
      %p236 = por %p234, %p235
      %p238 = scmp.ne.s32.totalorder %s223, %s237
      %p239 = scmp.eq.s32.totalorder %s29, 0
      %p240 = por %p238, %p239
      %s242 = sadd.s32 %s241, 1
      %p245 = scmp.eq.s32.totalorder %s23, 1
      %p246 = scmp.ne.s32.totalorder %s241, %s243
      %p247 = scmp.eq.s32.totalorder %s23, 0
      %p248 = por %p246, %p247
      %p249 = scmp.ne.s32.totalorder %s241, %s243
      %p250 = scmp.eq.s32.totalorder %s28, 1
      %p251 = por %p249, %p250
      %p252 = scmp.ne.s32.totalorder %s243, %s244
      %p253 = scmp.eq.s32.totalorder %s28, 0
      %p254 = por %p252, %p253
      %p255 = scmp.ne.s32.totalorder %s243, %s244
      %p256 = scmp.eq.s32.totalorder %s29, 1
      %p257 = por %p255, %p256
      %p259 = scmp.ne.s32.totalorder %s244, %s258
      %p260 = scmp.eq.s32.totalorder %s29, 0
      %p261 = por %p259, %p260
      %s262 = ssub.s32 %s23, %s30
      %p263 = scmp.eq.s32.totalorder %s262, 0
      %s265 = sadd.s32 %s264, 1
      %s266 = scalar_select %p263, %s264, %s265
      %p269 = pneg %p263
      %p270 = scmp.eq.s32.totalorder %s23, 1
      %p271 = por %p269, %p270
      %p272 = scmp.ne.s32.totalorder %s264, %s267
      %p273 = scmp.eq.s32.totalorder %s23, 0
      %p274 = por %p272, %p273
      %p275 = scmp.ne.s32.totalorder %s264, %s267
      %p276 = scmp.eq.s32.totalorder %s28, 1
      %p277 = por %p275, %p276
      %p278 = scmp.ne.s32.totalorder %s267, %s268
      %p279 = scmp.eq.s32.totalorder %s28, 0
      %p280 = por %p278, %p279
      %p281 = scmp.ne.s32.totalorder %s267, %s268
      %p282 = scmp.eq.s32.totalorder %s29, 1
      %p283 = por %p281, %p282
      %p285 = scmp.ne.s32.totalorder %s268, %s284
      %p286 = scmp.eq.s32.totalorder %s29, 0
      %p287 = por %p285, %p286
      %p288 = scmp.le.s32.totalorder 1, %s23
      %p289 = scmp.lt.s32.totalorder %s23, 3
      %p290 = pnand %p288, %p289
      %p291 = pneg %p290
      // Predicated region
      $region9: #{tpu_custom_call.1} parent=5 // pred_check
        _
      $region10: #{tpu_custom_call.1} parent=5 // pred_check_branch
        %293 = sbr.rel (%p290) target = $region12
      $region11: #{tpu_custom_call.1} parent=5 // pred_region
        %s294 = ssub.s32 %s23, 1
        // Predicated region
        $region13: #{tpu_custom_call.1} parent=11 // pred_check
          %p295 = pneg %p44
        $region14: #{tpu_custom_call.1} parent=11 // pred_check_branch
          %297 = sbr.rel (%p295) target = $region16
        $region15: #{tpu_custom_call.1} parent=11 // pred_region
          %s299 = ssub.s32 32, 32
          %300 = vsyncadd [#allocation3], %s299
          %s302 = sshll.u32 [#allocation2], 4
          %s303 = int_to_ptr.vmem [resolvable:$true] %s302
          %305 = dma.hbm_to_vmem [thread:$0]  %s0, 32, %s303, [#allocation3]
        $region16: #{tpu_custom_call.1} parent=11 // pred_fallthru
          _
        // Predicated region
        $region17: #{tpu_custom_call.1} parent=11 // pred_check
          %p306 = pneg %p65
        $region18: #{tpu_custom_call.1} parent=11 // pred_check_branch
          %308 = sbr.rel (%p306) target = $region20
        $region19: #{tpu_custom_call.1} parent=11 // pred_region
          %s310 = ssub.s32 128, 128
          %311 = vsyncadd [#allocation6], %s310
          %s313 = sshll.u32 [#allocation5], 4
          %s314 = int_to_ptr.vmem [resolvable:$true] %s313
          %316 = dma.hbm_to_vmem [thread:$0]  %s1, 128, %s314, [#allocation6]
        $region20: #{tpu_custom_call.1} parent=11 // pred_fallthru
          _
        // Predicated region
        $region21: #{tpu_custom_call.1} parent=11 // pred_check
          %p317 = pneg %p86
        $region22: #{tpu_custom_call.1} parent=11 // pred_check_branch
          %319 = sbr.rel (%p317) target = $region24
        $region23: #{tpu_custom_call.1} parent=11 // pred_region
          _
        $region24: #{tpu_custom_call.1} parent=11 // pred_fallthru
          _
        // Predicated region
        $region25: #{tpu_custom_call.1} parent=11 // pred_check
          %p320 = pneg %p107
        $region26: #{tpu_custom_call.1} parent=11 // pred_check_branch
          %322 = sbr.rel (%p320) target = $region28
        $region27: #{tpu_custom_call.1} parent=11 // pred_region
          %s324 = ssub.s32 64, 64
          %325 = vsyncadd [#allocation6], %s324
          %s327 = sshll.u32 [#allocation7], 4
          %s328 = int_to_ptr.vmem [resolvable:$true] %s327
          %330 = dma.hbm_to_vmem [thread:$0]  %s3, 64, %s328, [#allocation6]
        $region28: #{tpu_custom_call.1} parent=11 // pred_fallthru
          _
        // Predicated region
        $region29: #{tpu_custom_call.1} parent=11 // pred_check
          %p331 = pneg %p128
        $region30: #{tpu_custom_call.1} parent=11 // pred_check_branch
          %333 = sbr.rel (%p331) target = $region32
        $region31: #{tpu_custom_call.1} parent=11 // pred_region
          _
        $region32: #{tpu_custom_call.1} parent=11 // pred_fallthru
          _
        // Predicated region
        $region33: #{tpu_custom_call.1} parent=11 // pred_check
          %p334 = pneg %p149
        $region34: #{tpu_custom_call.1} parent=11 // pred_check_branch
          %336 = sbr.rel (%p334) target = $region36
        $region35: #{tpu_custom_call.1} parent=11 // pred_region
          _
        $region36: #{tpu_custom_call.1} parent=11 // pred_fallthru
          _
        // Predicated region
        $region37: #{tpu_custom_call.1} parent=11 // pred_check
          %p337 = pneg %p170
        $region38: #{tpu_custom_call.1} parent=11 // pred_check_branch
          %339 = sbr.rel (%p337) target = $region40
        $region39: #{tpu_custom_call.1} parent=11 // pred_region
          %s341 = ssub.s32 128, 128
          %342 = vsyncadd [#allocation9], %s341
          %s344 = sshll.u32 [#allocation8], 4
          %s345 = int_to_ptr.vmem [resolvable:$true] %s344
          %347 = dma.hbm_to_vmem [thread:$0]  %s6, 128, %s345, [#allocation9]
        $region40: #{tpu_custom_call.1} parent=11 // pred_fallthru
          _
        // Predicated region
        $region41: #{tpu_custom_call.1} parent=11 // pred_check
          %p348 = pneg %p191
        $region42: #{tpu_custom_call.1} parent=11 // pred_check_branch
          %350 = sbr.rel (%p348) target = $region44
        $region43: #{tpu_custom_call.1} parent=11 // pred_region
          _
        $region44: #{tpu_custom_call.1} parent=11 // pred_fallthru
          _
        // Predicated region
        $region45: #{tpu_custom_call.1} parent=11 // pred_check
          %p351 = pneg %p212
        $region46: #{tpu_custom_call.1} parent=11 // pred_check_branch
          %353 = sbr.rel (%p351) target = $region48
        $region47: #{tpu_custom_call.1} parent=11 // pred_region
          _
        $region48: #{tpu_custom_call.1} parent=11 // pred_fallthru
          _
        // Predicated region
        $region49: #{tpu_custom_call.1} parent=11 // pred_check
          %p354 = pneg %p233
        $region50: #{tpu_custom_call.1} parent=11 // pred_check_branch
          %356 = sbr.rel (%p354) target = $region52
        $region51: #{tpu_custom_call.1} parent=11 // pred_region
          _
        $region52: #{tpu_custom_call.1} parent=11 // pred_fallthru
          _
        // Predicated region
        $region53: #{tpu_custom_call.1} parent=11 // pred_check
          %p357 = pneg %p254
        $region54: #{tpu_custom_call.1} parent=11 // pred_check_branch
          %359 = sbr.rel (%p357) target = $region56
        $region55: #{tpu_custom_call.1} parent=11 // pred_region
          _
        $region56: #{tpu_custom_call.1} parent=11 // pred_fallthru
          _
      $region12: #{tpu_custom_call.1} parent=5 // pred_fallthru
        _
      %p360 = scmp.lt.s32.totalorder %s23, 2
      // Predicated region
      $region57: #{tpu_custom_call.1} parent=5 // pred_check
        %p361 = pneg %p360
      $region58: #{tpu_custom_call.1} parent=5 // pred_check_branch
        %363 = sbr.rel (%p361) target = $region60
      $region59: #{tpu_custom_call.1} parent=5 // pred_region
        _
      $region60: #{tpu_custom_call.1} parent=5 // pred_fallthru
        _
      %p364 = scmp.le.s32.totalorder 1, %s23
      %p365 = scmp.lt.s32.totalorder %s23, 3
      %p366 = pnand %p364, %p365
      %p367 = pneg %p366
      // Predicated region
      $region61: #{tpu_custom_call.1} parent=5 // pred_check
        _
      $region62: #{tpu_custom_call.1} parent=5 // pred_check_branch
        %369 = sbr.rel (%p366) target = $region64
      $region63: #{tpu_custom_call.1} parent=5 // pred_region
        %s370 = ssub.s32 %s23, 1
        // Predicated region
        $region65: #{tpu_custom_call.1} parent=63 // pred_check
          %p371 = pneg %p44
        $region66: #{tpu_custom_call.1} parent=63 // pred_check_branch
          %373 = sbr.rel (%p371) target = $region68
        $region67: #{tpu_custom_call.1} parent=63 // pred_region
          %374 = dma.done [#allocation3], 32
        $region68: #{tpu_custom_call.1} parent=63 // pred_fallthru
          _
        // Predicated region
        $region69: #{tpu_custom_call.1} parent=63 // pred_check
          %p375 = pneg %p65
        $region70: #{tpu_custom_call.1} parent=63 // pred_check_branch
          %377 = sbr.rel (%p375) target = $region72
        $region71: #{tpu_custom_call.1} parent=63 // pred_region
          %378 = dma.done [#allocation6], 128
        $region72: #{tpu_custom_call.1} parent=63 // pred_fallthru
          _
        // Predicated region
        $region73: #{tpu_custom_call.1} parent=63 // pred_check
          %p379 = pneg %p107
        $region74: #{tpu_custom_call.1} parent=63 // pred_check_branch
          %381 = sbr.rel (%p379) target = $region76
        $region75: #{tpu_custom_call.1} parent=63 // pred_region
          %382 = dma.done [#allocation6], 64
        $region76: #{tpu_custom_call.1} parent=63 // pred_fallthru
          _
        // Predicated region
        $region77: #{tpu_custom_call.1} parent=63 // pred_check
          %p383 = pneg %p170
        $region78: #{tpu_custom_call.1} parent=63 // pred_check_branch
          %385 = sbr.rel (%p383) target = $region80
        $region79: #{tpu_custom_call.1} parent=63 // pred_region
          %386 = dma.done [#allocation9], 128
        $region80: #{tpu_custom_call.1} parent=63 // pred_fallthru
          _
        %p387 = pneg %p44
        %p388 = pneg %p41
        %p389 = pneg %p65
        %p390 = pneg %p62
        %p391 = pneg %p86
        %p392 = pneg %p83
        %p393 = pneg %p107
        %p394 = pneg %p104
        %p395 = pneg %p128
        %p396 = pneg %p125
        %p397 = pneg %p149
        %p398 = pneg %p146
        %p399 = pneg %p170
        %p400 = pneg %p167
        %p401 = pneg %p191
        %p402 = pneg %p188
        %p403 = pneg %p212
        %p404 = pneg %p209
        %p405 = pneg %p233
        %p406 = pneg %p230
        %p407 = pneg %p254
        %p408 = pneg %p251
        %p409 = pneg %p280
        %p410 = pneg %p277
        %s411 = sand.u32 %s267, 1
        %s412 = scalar_lea.sflag [#allocation4], %s411
        %s413 = sand.u32 %s267, 1
        %s414 = smul.addr %s413, 8
        %s415 = scalar_lea.vmem [#allocation10], %s414
        %s416 = scalar_lea.vmem [#allocation2], %s28
        %v417 = vld [vmem:[%s416] sm:$0x1]
        %v418 = vld [vmem:[#allocation5] sm:$0xff]
        %v419 = vld [vmem:[%s2] sm:$0x1]
        %vm420 = vcmask 64512
        %v422 = vsel %vm420, %v417, 0
        %424 = vmatprep.subr.mxu0 0.0
        %425 = vmatpush1.msra.mxu0 %v418
        %426 = vmatprep.subr.mxu0 0.0
        %427 = vmatpush1.msra.mxu0 0.0
        %428 = vmatprep.subr.mxu0 0.0
        %429 = vmatpush1.msra.mxu0 0.0
        %430 = vmatprep.subr.mxu0 0.0
        %431 = vmatpush1.msra.mxu0 0.0
        %432 = vmatprep.subr.mxu0 0.0
        %433 = vmatpush1.msra.mxu0 0.0
        %434 = vmatprep.subr.mxu0 0.0
        %435 = vmatpush1.msra.mxu0 0.0
        %436 = vmatprep.subr.mxu0 0.0
        %437 = vmatpush1.msra.mxu0 0.0
        %438 = vmatprep.subr.mxu0 0.0
        %439 = vmatpush1.msra.mxu0 0.0
        %440 = vmatprep.subr.mxu0 0.0
        %441 = vmatpush1.msra.mxu0 0.0
        %442 = vmatprep.subr.mxu0 0.0
        %443 = vmatpush1.msra.mxu0 0.0
        %444 = vmatprep.subr.mxu0 0.0
        %445 = vmatpush1.msra.mxu0 0.0
        %446 = vmatprep.subr.mxu0 0.0
        %447 = vmatpush1.msra.mxu0 0.0
        %448 = vmatprep.subr.mxu0 0.0
        %449 = vmatpush1.msra.mxu0 0.0
        %450 = vmatprep.subr.mxu0 0.0
        %451 = vmatpush1.msra.mxu0 0.0
        %452 = vmatprep.subr.mxu0 0.0
        %453 = vmatpush1.msra.mxu0 0.0
        %454 = vmatprep.subr.mxu0 0.0
        %455 = vmatpush1.msra.mxu0 0.0
        %456 = vmatprep.subr.mxu0 0.0
        %457 = vmatpush1.msra.mxu0 0.0
        %458 = vmatprep.subr.mxu0 0.0
        %459 = vmatpush1.msra.mxu0 0.0
        %460 = vmatprep.subr.mxu0 0.0
        %461 = vmatpush1.msra.mxu0 0.0
        %462 = vmatprep.subr.mxu0 0.0
        %463 = vmatpush1.msra.mxu0 0.0
        %464 = vmatprep.subr.mxu0 0.0
        %465 = vmatpush1.msra.mxu0 0.0
        %466 = vmatprep.subr.mxu0 0.0
        %467 = vmatpush1.msra.mxu0 0.0
        %468 = vmatprep.subr.mxu0 0.0
        %469 = vmatpush1.msra.mxu0 0.0
        %470 = vmatprep.subr.mxu0 0.0
        %471 = vmatpush1.msra.mxu0 0.0
        %472 = vmatprep.subr.mxu0 0.0
        %473 = vmatpush1.msra.mxu0 0.0
        %474 = vmatprep.subr.mxu0 0.0
        %475 = vmatpush1.msra.mxu0 0.0
        %476 = vmatprep.subr.mxu0 0.0
        %477 = vmatpush1.msra.mxu0 0.0
        %478 = vmatprep.subr.mxu0 0.0
        %479 = vmatpush1.msra.mxu0 0.0
        %480 = vmatprep.subr.mxu0 0.0
        %481 = vmatpush1.msra.mxu0 0.0
        %482 = vmatprep.subr.mxu0 0.0
        %483 = vmatpush1.msra.mxu0 0.0
        %484 = vmatprep.subr.mxu0 0.0
        %485 = vmatpush1.msra.mxu0 0.0
        %486 = vmatprep.subr.mxu0 0.0
        %487 = vmatpush1.msra.mxu0 0.0
        %488 = vmatprep.mubr.f32.mxu0 0.0
        %489 = vmatmul.mubr.f32.gmra.mrb[0].mxu0 %v422
        %v490 = vpop.f32.mrb[0].mxu0
        %v491 = vadd.f32 %v419, %v490
        %v492 = vpop.f32.mrb[0].mxu0
        %493 = vdwg.mxu0
        %v495 = vrot.slane %v491, 7
        %496 = vrot.lane.b32.xlu0 %v495, 124
        %v497 = vpop.permute.xlu0 %496
        %v499 = vrot.slane %v491, 6
        %500 = vrot.lane.b32.xlu0 %v499, 120
        %v501 = vpop.permute.xlu0 %500
        %v503 = vrot.slane %v491, 5
        %504 = vrot.lane.b32.xlu0 %v503, 116
        %v505 = vpop.permute.xlu0 %504
        %v507 = vrot.slane %v491, 4
        %508 = vrot.lane.b32.xlu0 %v507, 112
        %v509 = vpop.permute.xlu0 %508
        %v511 = vrot.slane %v491, 3
        %512 = vrot.lane.b32.xlu0 %v511, 108
        %v513 = vpop.permute.xlu0 %512
        %v515 = vrot.slane %v491, 2
        %516 = vrot.lane.b32.xlu0 %v515, 104
        %v517 = vpop.permute.xlu0 %516
        %v519 = vrot.slane %v491, 1
        %520 = vrot.lane.b32.xlu0 %v519, 100
        %v521 = vpop.permute.xlu0 %520
        %523 = vrot.lane.b32.xlu0 %v491, 96
        %v524 = vpop.permute.xlu0 %523
        %526 = vrot.lane.b32.xlu0 %v495, 92
        %v527 = vpop.permute.xlu0 %526
        %529 = vrot.lane.b32.xlu0 %v499, 88
        %v530 = vpop.permute.xlu0 %529
        %532 = vrot.lane.b32.xlu0 %v503, 84
        %v533 = vpop.permute.xlu0 %532
        %535 = vrot.lane.b32.xlu0 %v507, 80
        %v536 = vpop.permute.xlu0 %535
        %538 = vrot.lane.b32.xlu0 %v511, 76
        %v539 = vpop.permute.xlu0 %538
        %541 = vrot.lane.b32.xlu0 %v515, 72
        %v542 = vpop.permute.xlu0 %541
        %544 = vrot.lane.b32.xlu0 %v519, 68
        %v545 = vpop.permute.xlu0 %544
        %vm547 = vcmask 1040384
        %v548 = vsel %vm547, %v491, %v497
        %vm549 = vcmask 1041408
        %v550 = vsel %vm549, %v548, %v501
        %vm551 = vcmask 1042432
        %v552 = vsel %vm551, %v550, %v505
        %vm553 = vcmask 1043456
        %v554 = vsel %vm553, %v552, %v509
        %vm555 = vcmask 1044480
        %v556 = vsel %vm555, %v554, %v513
        %vm557 = vcmask 1045504
        %v558 = vsel %vm557, %v556, %v517
        %vm559 = vcmask 1046528
        %v560 = vsel %vm559, %v558, %v521
        %v561 = vsel %vm547, %v524, %v527
        %v562 = vsel %vm549, %v561, %v530
        %v563 = vsel %vm551, %v562, %v533
        %v564 = vsel %vm553, %v563, %v536
        %v565 = vsel %vm555, %v564, %v539
        %v566 = vsel %vm557, %v565, %v542
        %v567 = vsel %vm559, %v566, %v545
        %v568 = vld [vmem:[#allocation7] sm:$0xf]
        %vm569 = vcmask 31744
        %v571 = vsel %vm569, %v560, 0
        %v574 = vsel %vm569, %v567, 0
        %v577 = vsel %vm553, %v568, 0
        %579 = vmatprep.subr.mxu0 0.0
        %580 = vmatpush1.msra.mxu0 %v577
        %581 = vmatprep.subr.mxu0 0.0
        %582 = vmatpush1.msra.mxu0 0.0
        %583 = vmatprep.subr.mxu0 0.0
        %584 = vmatpush1.msra.mxu0 0.0
        %585 = vmatprep.subr.mxu0 0.0
        %586 = vmatpush1.msra.mxu0 0.0
        %587 = vmatprep.subr.mxu0 0.0
        %588 = vmatpush1.msra.mxu0 0.0
        %589 = vmatprep.subr.mxu0 0.0
        %590 = vmatpush1.msra.mxu0 0.0
        %591 = vmatprep.subr.mxu0 0.0
        %592 = vmatpush1.msra.mxu0 0.0
        %593 = vmatprep.subr.mxu0 0.0
        %594 = vmatpush1.msra.mxu0 0.0
        %595 = vmatprep.subr.mxu0 0.0
        %596 = vmatpush1.msra.mxu0 0.0
        %597 = vmatprep.subr.mxu0 0.0
        %598 = vmatpush1.msra.mxu0 0.0
        %599 = vmatprep.subr.mxu0 0.0
        %600 = vmatpush1.msra.mxu0 0.0
        %601 = vmatprep.subr.mxu0 0.0
        %602 = vmatpush1.msra.mxu0 0.0
        %603 = vmatprep.subr.mxu0 0.0
        %604 = vmatpush1.msra.mxu0 0.0
        %605 = vmatprep.subr.mxu0 0.0
        %606 = vmatpush1.msra.mxu0 0.0
        %607 = vmatprep.subr.mxu0 0.0
        %608 = vmatpush1.msra.mxu0 0.0
        %609 = vmatprep.subr.mxu0 0.0
        %610 = vmatpush1.msra.mxu0 0.0
        %611 = vmatprep.subr.mxu0 0.0
        %612 = vmatpush1.msra.mxu0 0.0
        %613 = vmatprep.subr.mxu0 0.0
        %614 = vmatpush1.msra.mxu0 0.0
        %615 = vmatprep.subr.mxu0 0.0
        %616 = vmatpush1.msra.mxu0 0.0
        %617 = vmatprep.subr.mxu0 0.0
        %618 = vmatpush1.msra.mxu0 0.0
        %619 = vmatprep.subr.mxu0 0.0
        %620 = vmatpush1.msra.mxu0 0.0
        %621 = vmatprep.subr.mxu0 0.0
        %622 = vmatpush1.msra.mxu0 0.0
        %623 = vmatprep.subr.mxu0 0.0
        %624 = vmatpush1.msra.mxu0 0.0
        %625 = vmatprep.subr.mxu0 0.0
        %626 = vmatpush1.msra.mxu0 0.0
        %627 = vmatprep.subr.mxu0 0.0
        %628 = vmatpush1.msra.mxu0 0.0
        %629 = vmatprep.subr.mxu0 0.0
        %630 = vmatpush1.msra.mxu0 0.0
        %631 = vmatprep.subr.mxu0 0.0
        %632 = vmatpush1.msra.mxu0 0.0
        %633 = vmatprep.subr.mxu0 0.0
        %634 = vmatpush1.msra.mxu0 0.0
        %635 = vmatprep.subr.mxu0 0.0
        %636 = vmatpush1.msra.mxu0 0.0
        %637 = vmatprep.subr.mxu0 0.0
        %638 = vmatpush1.msra.mxu0 0.0
        %639 = vmatprep.subr.mxu0 0.0
        %640 = vmatpush1.msra.mxu0 0.0
        %641 = vmatprep.subr.mxu0 0.0
        %642 = vmatpush1.msra.mxu0 0.0
        %643 = vmatprep.mubr.f32.mxu0 0.0
        %644 = vmatmul.mubr.f32.gmra.mrb[0].mxu0 %v571
        %v645 = vpop.f32.mrb[0].mxu0
        %v646 = vadd.f32 0.0, %v645
        %v647 = vpop.f32.mrb[0].mxu0
        %648 = vmatprep.mubr.f32.mxu0 0.0
        %649 = vmatmul.mubr.f32.gmra.mrb[0].mxu0 %v574
        %v650 = vpop.f32.mrb[0].mxu0
        %v651 = vadd.f32 0.0, %v650
        %v652 = vpop.f32.mrb[0].mxu0
        %653 = vdwg.mxu0
        %v654 = vld [vmem:[%s4] sm:$0xff]
        %v655 = vld [vmem:[%s4 + $0x8] sm:$0xff]
        %v656 = vld [vmem:[%s4 + $0x10] sm:$0xff]
        %v657 = vld [vmem:[%s4 + $0x18] sm:$0xff]
        %660 = vrot.lane.b32.xlu0 %v646, 1
        %v661 = vpop.permute.xlu0 %660
        %662 = vrot.lane.b32.xlu0 %v651, 1
        %v663 = vpop.permute.xlu0 %662
        %vm666 = vcmask 7168
        %v667 = vsel %vm666, 0.0, %v661
        %v668 = vsel %vm666, 0.0, %v663
        %vm669 = vcmask 72704
        %v670 = vsel %vm669, %v667, 0.0
        %v671 = vsel %vm669, %v668, 0.0
        %674 = vrot.lane.b32.xlu0 %v670, 127
        %v675 = vpop.permute.xlu0 %674
        %676 = vrot.lane.b32.xlu0 %v671, 127
        %v677 = vpop.permute.xlu0 %676
        %680 = vrot.lane.b32.xlu0 %v670, 126
        %v681 = vpop.permute.xlu0 %680
        %682 = vrot.lane.b32.xlu0 %v671, 126
        %v683 = vpop.permute.xlu0 %682
        %v686 = vld [vmem:[%s5] sm:$0xff]
        %v687 = vld [vmem:[%s5 + $0x8] sm:$0xff]
        %v688 = vld [vmem:[%s5 + $0x10] sm:$0xff]
        %v689 = vld [vmem:[%s5 + $0x18] sm:$0xff]
        %691 = vset.pattern.permute.xlu0 0
        %692 = vperm.xlu0 %691, %v686
        %v693 = vpop.permute.xlu0 %692
        %696 = vset.pattern.permute.xlu0 0
        %697 = vperm.xlu0 %696, %v687
        %v698 = vpop.permute.xlu0 %697
        %701 = vset.pattern.permute.xlu0 0
        %702 = vperm.xlu0 %701, %v688
        %v703 = vpop.permute.xlu0 %702
        %706 = vset.pattern.permute.xlu0 0
        %707 = vperm.xlu0 %706, %v689
        %v708 = vpop.permute.xlu0 %707
        %vm710 = vcmask 392192
        %v712 = vsel %vm710, %v654, 0
        %v715 = vsel %vm710, %v655, 0
        %v718 = vsel %vm710, %v656, 0
        %v721 = vsel %vm710, %v657, 0
        %723 = vmatprep.subr.mxu0 0.0
        %724 = vmatpush1.msra.mxu0 %v670
        %725 = vmatprep.subr.mxu0 0.0
        %726 = vmatpush1.msra.mxu0 %v671
        %727 = vmatprep.subr.mxu0 0.0
        %728 = vmatpush1.msra.mxu0 %v675
        %729 = vmatprep.subr.mxu0 0.0
        %730 = vmatpush1.msra.mxu0 %v677
        %731 = vmatprep.subr.mxu0 0.0
        %732 = vmatpush1.msra.mxu0 %v681
        %733 = vmatprep.subr.mxu0 0.0
        %734 = vmatpush1.msra.mxu0 %v683
        %735 = vmatprep.subr.mxu0 0.0
        %736 = vmatpush1.msra.mxu0 0.0
        %737 = vmatprep.subr.mxu0 0.0
        %738 = vmatpush1.msra.mxu0 0.0
        %739 = vmatprep.subr.mxu0 0.0
        %740 = vmatpush1.msra.mxu0 0.0
        %741 = vmatprep.subr.mxu0 0.0
        %742 = vmatpush1.msra.mxu0 0.0
        %743 = vmatprep.subr.mxu0 0.0
        %744 = vmatpush1.msra.mxu0 0.0
        %745 = vmatprep.subr.mxu0 0.0
        %746 = vmatpush1.msra.mxu0 0.0
        %747 = vmatprep.subr.mxu0 0.0
        %748 = vmatpush1.msra.mxu0 0.0
        %749 = vmatprep.subr.mxu0 0.0
        %750 = vmatpush1.msra.mxu0 0.0
        %751 = vmatprep.subr.mxu0 0.0
        %752 = vmatpush1.msra.mxu0 0.0
        %753 = vmatprep.subr.mxu0 0.0
        %754 = vmatpush1.msra.mxu0 0.0
        %755 = vmatprep.subr.mxu0 0.0
        %756 = vmatpush1.msra.mxu0 0.0
        %757 = vmatprep.subr.mxu0 0.0
        %758 = vmatpush1.msra.mxu0 0.0
        %759 = vmatprep.subr.mxu0 0.0
        %760 = vmatpush1.msra.mxu0 0.0
        %761 = vmatprep.subr.mxu0 0.0
        %762 = vmatpush1.msra.mxu0 0.0
        %763 = vmatprep.subr.mxu0 0.0
        %764 = vmatpush1.msra.mxu0 0.0
        %765 = vmatprep.subr.mxu0 0.0
        %766 = vmatpush1.msra.mxu0 0.0
        %767 = vmatprep.subr.mxu0 0.0
        %768 = vmatpush1.msra.mxu0 0.0
        %769 = vmatprep.subr.mxu0 0.0
        %770 = vmatpush1.msra.mxu0 0.0
        %771 = vmatprep.subr.mxu0 0.0
        %772 = vmatpush1.msra.mxu0 0.0
        %773 = vmatprep.subr.mxu0 0.0
        %774 = vmatpush1.msra.mxu0 0.0
        %775 = vmatprep.subr.mxu0 0.0
        %776 = vmatpush1.msra.mxu0 0.0
        %777 = vmatprep.subr.mxu0 0.0
        %778 = vmatpush1.msra.mxu0 0.0
        %779 = vmatprep.subr.mxu0 0.0
        %780 = vmatpush1.msra.mxu0 0.0
        %781 = vmatprep.subr.mxu0 0.0
        %782 = vmatpush1.msra.mxu0 0.0
        %783 = vmatprep.subr.mxu0 0.0
        %784 = vmatpush1.msra.mxu0 0.0
        %785 = vmatprep.subr.mxu0 0.0
        %786 = vmatpush1.msra.mxu0 0.0
        %787 = vmatprep.mubr.f32.mxu0 0.0
        %788 = vmatmul.mubr.f32.gmra.mrb[0].mxu0 %v712
        %v789 = vpop.f32.mrb[0].mxu0
        %v790 = vadd.f32 %v693, %v789
        %v791 = vpop.f32.mrb[0].mxu0
        %792 = vmatprep.mubr.f32.mxu0 0.0
        %793 = vmatmul.mubr.f32.gmra.mrb[0].mxu0 %v715
        %v794 = vpop.f32.mrb[0].mxu0
        %v795 = vadd.f32 %v698, %v794
        %v796 = vpop.f32.mrb[0].mxu0
        %797 = vmatprep.mubr.f32.mxu0 0.0
        %798 = vmatmul.mubr.f32.gmra.mrb[0].mxu0 %v718
        %v799 = vpop.f32.mrb[0].mxu0
        %v800 = vadd.f32 %v703, %v799
        %v801 = vpop.f32.mrb[0].mxu0
        %802 = vmatprep.mubr.f32.mxu0 0.0
        %803 = vmatmul.mubr.f32.gmra.mrb[0].mxu0 %v721
        %v804 = vpop.f32.mrb[0].mxu0
        %v805 = vadd.f32 %v708, %v804
        %v806 = vpop.f32.mrb[0].mxu0
        %807 = vdwg.mxu0
        %v808 = vmax.f32 %v790, 0.0
        %v809 = vmax.f32 %v795, 0.0
        %v810 = vmax.f32 %v800, 0.0
        %v811 = vmax.f32 %v805, 0.0
        %v812 = vld [vmem:[#allocation8] sm:$0xff]
        %v814 = vsel %vm420, %v808, 0
        %v817 = vsel %vm420, %v809, 0
        %v820 = vsel %vm420, %v810, 0
        %v823 = vsel %vm420, %v811, 0
        %825 = vmatprep.subr.mxu0 0.0
        %826 = vmatpush1.msra.mxu0 %v812
        %827 = vmatprep.subr.mxu0 0.0
        %828 = vmatpush1.msra.mxu0 0.0
        %829 = vmatprep.subr.mxu0 0.0
        %830 = vmatpush1.msra.mxu0 0.0
        %831 = vmatprep.subr.mxu0 0.0
        %832 = vmatpush1.msra.mxu0 0.0
        %833 = vmatprep.subr.mxu0 0.0
        %834 = vmatpush1.msra.mxu0 0.0
        %835 = vmatprep.subr.mxu0 0.0
        %836 = vmatpush1.msra.mxu0 0.0
        %837 = vmatprep.subr.mxu0 0.0
        %838 = vmatpush1.msra.mxu0 0.0
        %839 = vmatprep.subr.mxu0 0.0
        %840 = vmatpush1.msra.mxu0 0.0
        %841 = vmatprep.subr.mxu0 0.0
        %842 = vmatpush1.msra.mxu0 0.0
        %843 = vmatprep.subr.mxu0 0.0
        %844 = vmatpush1.msra.mxu0 0.0
        %845 = vmatprep.subr.mxu0 0.0
        %846 = vmatpush1.msra.mxu0 0.0
        %847 = vmatprep.subr.mxu0 0.0
        %848 = vmatpush1.msra.mxu0 0.0
        %849 = vmatprep.subr.mxu0 0.0
        %850 = vmatpush1.msra.mxu0 0.0
        %851 = vmatprep.subr.mxu0 0.0
        %852 = vmatpush1.msra.mxu0 0.0
        %853 = vmatprep.subr.mxu0 0.0
        %854 = vmatpush1.msra.mxu0 0.0
        %855 = vmatprep.subr.mxu0 0.0
        %856 = vmatpush1.msra.mxu0 0.0
        %857 = vmatprep.subr.mxu0 0.0
        %858 = vmatpush1.msra.mxu0 0.0
        %859 = vmatprep.subr.mxu0 0.0
        %860 = vmatpush1.msra.mxu0 0.0
        %861 = vmatprep.subr.mxu0 0.0
        %862 = vmatpush1.msra.mxu0 0.0
        %863 = vmatprep.subr.mxu0 0.0
        %864 = vmatpush1.msra.mxu0 0.0
        %865 = vmatprep.subr.mxu0 0.0
        %866 = vmatpush1.msra.mxu0 0.0
        %867 = vmatprep.subr.mxu0 0.0
        %868 = vmatpush1.msra.mxu0 0.0
        %869 = vmatprep.subr.mxu0 0.0
        %870 = vmatpush1.msra.mxu0 0.0
        %871 = vmatprep.subr.mxu0 0.0
        %872 = vmatpush1.msra.mxu0 0.0
        %873 = vmatprep.subr.mxu0 0.0
        %874 = vmatpush1.msra.mxu0 0.0
        %875 = vmatprep.subr.mxu0 0.0
        %876 = vmatpush1.msra.mxu0 0.0
        %877 = vmatprep.subr.mxu0 0.0
        %878 = vmatpush1.msra.mxu0 0.0
        %879 = vmatprep.subr.mxu0 0.0
        %880 = vmatpush1.msra.mxu0 0.0
        %881 = vmatprep.subr.mxu0 0.0
        %882 = vmatpush1.msra.mxu0 0.0
        %883 = vmatprep.subr.mxu0 0.0
        %884 = vmatpush1.msra.mxu0 0.0
        %885 = vmatprep.subr.mxu0 0.0
        %886 = vmatpush1.msra.mxu0 0.0
        %887 = vmatprep.subr.mxu0 0.0
        %888 = vmatpush1.msra.mxu0 0.0
        %889 = vmatprep.mubr.f32.mxu0 0.0
        %890 = vmatmul.mubr.f32.gmra.mrb[0].mxu0 %v814
        %v891 = vpop.f32.mrb[0].mxu0
        %v892 = vadd.f32 0.0, %v891
        %v893 = vpop.f32.mrb[0].mxu0
        %894 = vmatprep.mubr.f32.mxu0 0.0
        %895 = vmatmul.mubr.f32.gmra.mrb[0].mxu0 %v817
        %v896 = vpop.f32.mrb[0].mxu0
        %v897 = vadd.f32 0.0, %v896
        %v898 = vpop.f32.mrb[0].mxu0
        %899 = vmatprep.mubr.f32.mxu0 0.0
        %900 = vmatmul.mubr.f32.gmra.mrb[0].mxu0 %v820
        %v901 = vpop.f32.mrb[0].mxu0
        %v902 = vadd.f32 0.0, %v901
        %v903 = vpop.f32.mrb[0].mxu0
        %904 = vmatprep.mubr.f32.mxu0 0.0
        %905 = vmatmul.mubr.f32.gmra.mrb[0].mxu0 %v823
        %v906 = vpop.f32.mrb[0].mxu0
        %v907 = vadd.f32 0.0, %v906
        %v908 = vpop.f32.mrb[0].mxu0
        %909 = vdwg.mxu0
        %v910 = vld [vmem:[%s7] sm:$0xff]
        %v911 = vld [vmem:[%s7 + $0x8] sm:$0xff]
        %v912 = vld [vmem:[%s7 + $0x10] sm:$0xff]
        %v913 = vld [vmem:[%s7 + $0x18] sm:$0xff]
        %918 = vrot.lane.b32.xlu0 %v892, 3
        %v919 = vpop.permute.xlu0 %918
        %920 = vrot.lane.b32.xlu0 %v897, 3
        %v921 = vpop.permute.xlu0 %920
        %922 = vrot.lane.b32.xlu0 %v902, 3
        %v923 = vpop.permute.xlu0 %922
        %924 = vrot.lane.b32.xlu0 %v907, 3
        %v925 = vpop.permute.xlu0 %924
        %vm930 = vcmask 23552
        %v931 = vsel %vm930, 0.0, %v919
        %v932 = vsel %vm930, 0.0, %v921
        %v933 = vsel %vm930, 0.0, %v923
        %v934 = vsel %vm930, 0.0, %v925
        %vm935 = vcmask 154624
        %v936 = vsel %vm935, %v931, 0.0
        %v937 = vsel %vm935, %v932, 0.0
        %v938 = vsel %vm935, %v933, 0.0
        %v939 = vsel %vm935, %v934, 0.0
        %944 = vrot.lane.b32.xlu0 %v936, 127
        %v945 = vpop.permute.xlu0 %944
        %946 = vrot.lane.b32.xlu0 %v937, 127
        %v947 = vpop.permute.xlu0 %946
        %948 = vrot.lane.b32.xlu0 %v938, 127
        %v949 = vpop.permute.xlu0 %948
        %950 = vrot.lane.b32.xlu0 %v939, 127
        %v951 = vpop.permute.xlu0 %950
        %956 = vrot.lane.b32.xlu0 %v936, 126
        %v957 = vpop.permute.xlu0 %956
        %958 = vrot.lane.b32.xlu0 %v937, 126
        %v959 = vpop.permute.xlu0 %958
        %960 = vrot.lane.b32.xlu0 %v938, 126
        %v961 = vpop.permute.xlu0 %960
        %962 = vrot.lane.b32.xlu0 %v939, 126
        %v963 = vpop.permute.xlu0 %962
        %968 = vrot.lane.b32.xlu0 %v936, 125
        %v969 = vpop.permute.xlu0 %968
        %970 = vrot.lane.b32.xlu0 %v937, 125
        %v971 = vpop.permute.xlu0 %970
        %972 = vrot.lane.b32.xlu0 %v938, 125
        %v973 = vpop.permute.xlu0 %972
        %974 = vrot.lane.b32.xlu0 %v939, 125
        %v975 = vpop.permute.xlu0 %974
        %980 = vrot.lane.b32.xlu0 %v936, 124
        %v981 = vpop.permute.xlu0 %980
        %982 = vrot.lane.b32.xlu0 %v937, 124
        %v983 = vpop.permute.xlu0 %982
        %984 = vrot.lane.b32.xlu0 %v938, 124
        %v985 = vpop.permute.xlu0 %984
        %986 = vrot.lane.b32.xlu0 %v939, 124
        %v987 = vpop.permute.xlu0 %986
        %992 = vrot.lane.b32.xlu0 %v936, 123
        %v993 = vpop.permute.xlu0 %992
        %994 = vrot.lane.b32.xlu0 %v937, 123
        %v995 = vpop.permute.xlu0 %994
        %996 = vrot.lane.b32.xlu0 %v938, 123
        %v997 = vpop.permute.xlu0 %996
        %998 = vrot.lane.b32.xlu0 %v939, 123
        %v999 = vpop.permute.xlu0 %998
        %1004 = vrot.lane.b32.xlu0 %v936, 122
        %v1005 = vpop.permute.xlu0 %1004
        %1006 = vrot.lane.b32.xlu0 %v937, 122
        %v1007 = vpop.permute.xlu0 %1006
        %1008 = vrot.lane.b32.xlu0 %v938, 122
        %v1009 = vpop.permute.xlu0 %1008
        %1010 = vrot.lane.b32.xlu0 %v939, 122
        %v1011 = vpop.permute.xlu0 %1010
        %v1016 = vld [vmem:[%s8] sm:$0xff]
        %v1017 = vld [vmem:[%s8 + $0x8] sm:$0xff]
        %1019 = vset.pattern.permute.xlu0 0
        %1020 = vperm.xlu0 %1019, %v1016
        %v1021 = vpop.permute.xlu0 %1020
        %1024 = vset.pattern.permute.xlu0 0
        %1025 = vperm.xlu0 %1024, %v1017
        %v1026 = vpop.permute.xlu0 %1025
        %vm1028 = vcmask 785408
        %v1030 = vsel %vm1028, %v911, 0
        %v1033 = vsel %vm1028, %v913, 0
        %1035 = vmatprep.subr.mxu0 0.0
        %1036 = vmatpush1.msra.mxu0 %v936
        %1037 = vmatprep.subr.mxu0 0.0
        %1038 = vmatpush1.msra.mxu0 %v937
        %1039 = vmatprep.subr.mxu0 0.0
        %1040 = vmatpush1.msra.mxu0 %v938
        %1041 = vmatprep.subr.mxu0 0.0
        %1042 = vmatpush1.msra.mxu0 %v939
        %1043 = vmatprep.subr.mxu0 0.0
        %1044 = vmatpush1.msra.mxu0 %v945
        %1045 = vmatprep.subr.mxu0 0.0
        %1046 = vmatpush1.msra.mxu0 %v947
        %1047 = vmatprep.subr.mxu0 0.0
        %1048 = vmatpush1.msra.mxu0 %v949
        %1049 = vmatprep.subr.mxu0 0.0
        %1050 = vmatpush1.msra.mxu0 %v951
        %1051 = vmatprep.subr.mxu0 0.0
        %1052 = vmatpush1.msra.mxu0 %v957
        %1053 = vmatprep.subr.mxu0 0.0
        %1054 = vmatpush1.msra.mxu0 %v959
        %1055 = vmatprep.subr.mxu0 0.0
        %1056 = vmatpush1.msra.mxu0 %v961
        %1057 = vmatprep.subr.mxu0 0.0
        %1058 = vmatpush1.msra.mxu0 %v963
        %1059 = vmatprep.subr.mxu0 0.0
        %1060 = vmatpush1.msra.mxu0 %v969
        %1061 = vmatprep.subr.mxu0 0.0
        %1062 = vmatpush1.msra.mxu0 %v971
        %1063 = vmatprep.subr.mxu0 0.0
        %1064 = vmatpush1.msra.mxu0 %v973
        %1065 = vmatprep.subr.mxu0 0.0
        %1066 = vmatpush1.msra.mxu0 %v975
        %1067 = vmatprep.subr.mxu0 0.0
        %1068 = vmatpush1.msra.mxu0 %v981
        %1069 = vmatprep.subr.mxu0 0.0
        %1070 = vmatpush1.msra.mxu0 %v983
        %1071 = vmatprep.subr.mxu0 0.0
        %1072 = vmatpush1.msra.mxu0 %v985
        %1073 = vmatprep.subr.mxu0 0.0
        %1074 = vmatpush1.msra.mxu0 %v987
        %1075 = vmatprep.subr.mxu0 0.0
        %1076 = vmatpush1.msra.mxu0 %v993
        %1077 = vmatprep.subr.mxu0 0.0
        %1078 = vmatpush1.msra.mxu0 %v995
        %1079 = vmatprep.subr.mxu0 0.0
        %1080 = vmatpush1.msra.mxu0 %v997
        %1081 = vmatprep.subr.mxu0 0.0
        %1082 = vmatpush1.msra.mxu0 %v999
        %1083 = vmatprep.subr.mxu0 0.0
        %1084 = vmatpush1.msra.mxu0 %v1005
        %1085 = vmatprep.subr.mxu0 0.0
        %1086 = vmatpush1.msra.mxu0 %v1007
        %1087 = vmatprep.subr.mxu0 0.0
        %1088 = vmatpush1.msra.mxu0 %v1009
        %1089 = vmatprep.subr.mxu0 0.0
        %1090 = vmatpush1.msra.mxu0 %v1011
        %1091 = vmatprep.subr.mxu0 0.0
        %1092 = vmatpush1.msra.mxu0 0.0
        %1093 = vmatprep.subr.mxu0 0.0
        %1094 = vmatpush1.msra.mxu0 0.0
        %1095 = vmatprep.subr.mxu0 0.0
        %1096 = vmatpush1.msra.mxu0 0.0
        %1097 = vmatprep.subr.mxu0 0.0
        %1098 = vmatpush1.msra.mxu0 0.0
        %1099 = vmatprep.mubr.f32.mxu0 %v1030
        %1100 = vmatmul.mubr.f32.gmra.mrb[0].mxu0 %v910
        %v1101 = vpop.f32.mrb[0].mxu0
        %v1102 = vadd.f32 %v1021, %v1101
        %v1103 = vpop.f32.mrb[0].mxu0
        %1104 = vmatprep.mubr.f32.mxu0 %v1033
        %1105 = vmatmul.mubr.f32.gmra.mrb[0].mxu0 %v912
        %v1106 = vpop.f32.mrb[0].mxu0
        %v1107 = vadd.f32 %v1026, %v1106
        %v1108 = vpop.f32.mrb[0].mxu0
        %1109 = vdwg.mxu0
        %v1110 = vmax.f32 %v1102, 0.0
        %v1111 = vmax.f32 %v1107, 0.0
        %v1112 = vld [vmem:[%s9] sm:$0xff]
        %v1113 = vld [vmem:[%s9 + $0x8] sm:$0xff]
        %1116 = vrot.lane.b32.xlu0 %v1110, 5
        %v1117 = vpop.permute.xlu0 %1116
        %1118 = vrot.lane.b32.xlu0 %v1111, 5
        %v1119 = vpop.permute.xlu0 %1118
        %vm1122 = vcmask 39936
        %v1123 = vsel %vm1122, 0.0, %v1117
        %v1124 = vsel %vm1122, 0.0, %v1119
        %vm1125 = vcmask 171008
        %v1126 = vsel %vm1125, %v1123, 0.0
        %v1127 = vsel %vm1125, %v1124, 0.0
        %1130 = vrot.lane.b32.xlu0 %v1126, 127
        %v1131 = vpop.permute.xlu0 %1130
        %1132 = vrot.lane.b32.xlu0 %v1127, 127
        %v1133 = vpop.permute.xlu0 %1132
        %1136 = vrot.lane.b32.xlu0 %v1126, 126
        %v1137 = vpop.permute.xlu0 %1136
        %1138 = vrot.lane.b32.xlu0 %v1127, 126
        %v1139 = vpop.permute.xlu0 %1138
        %1142 = vrot.lane.b32.xlu0 %v1126, 125
        %v1143 = vpop.permute.xlu0 %1142
        %1144 = vrot.lane.b32.xlu0 %v1127, 125
        %v1145 = vpop.permute.xlu0 %1144
        %1148 = vrot.lane.b32.xlu0 %v1126, 124
        %v1149 = vpop.permute.xlu0 %1148
        %1150 = vrot.lane.b32.xlu0 %v1127, 124
        %v1151 = vpop.permute.xlu0 %1150
        %1154 = vrot.lane.b32.xlu0 %v1126, 123
        %v1155 = vpop.permute.xlu0 %1154
        %1156 = vrot.lane.b32.xlu0 %v1127, 123
        %v1157 = vpop.permute.xlu0 %1156
        %1160 = vrot.lane.b32.xlu0 %v1126, 122
        %v1161 = vpop.permute.xlu0 %1160
        %1162 = vrot.lane.b32.xlu0 %v1127, 122
        %v1163 = vpop.permute.xlu0 %1162
        %1166 = vrot.lane.b32.xlu0 %v1126, 121
        %v1167 = vpop.permute.xlu0 %1166
        %1168 = vrot.lane.b32.xlu0 %v1127, 121
        %v1169 = vpop.permute.xlu0 %1168
        %1172 = vrot.lane.b32.xlu0 %v1126, 120
        %v1173 = vpop.permute.xlu0 %1172
        %1174 = vrot.lane.b32.xlu0 %v1127, 120
        %v1175 = vpop.permute.xlu0 %1174
        %1178 = vrot.lane.b32.xlu0 %v1126, 119
        %v1179 = vpop.permute.xlu0 %1178
        %1180 = vrot.lane.b32.xlu0 %v1127, 119
        %v1181 = vpop.permute.xlu0 %1180
        %1184 = vrot.lane.b32.xlu0 %v1126, 118
        %v1185 = vpop.permute.xlu0 %1184
        %1186 = vrot.lane.b32.xlu0 %v1127, 118
        %v1187 = vpop.permute.xlu0 %1186
        %v1190 = vld [vmem:[%s10] sm:$0xff]
        %1192 = vset.pattern.permute.xlu0 0
        %1193 = vperm.xlu0 %1192, %v1190
        %v1194 = vpop.permute.xlu0 %1193
        %v1197 = vsel %vm710, %v1113, 0
        %1199 = vmatprep.subr.mxu0 0.0
        %1200 = vmatpush1.msra.mxu0 %v1126
        %1201 = vmatprep.subr.mxu0 0.0
        %1202 = vmatpush1.msra.mxu0 %v1127
        %1203 = vmatprep.subr.mxu0 0.0
        %1204 = vmatpush1.msra.mxu0 %v1131
        %1205 = vmatprep.subr.mxu0 0.0
        %1206 = vmatpush1.msra.mxu0 %v1133
        %1207 = vmatprep.subr.mxu0 0.0
        %1208 = vmatpush1.msra.mxu0 %v1137
        %1209 = vmatprep.subr.mxu0 0.0
        %1210 = vmatpush1.msra.mxu0 %v1139
        %1211 = vmatprep.subr.mxu0 0.0
        %1212 = vmatpush1.msra.mxu0 %v1143
        %1213 = vmatprep.subr.mxu0 0.0
        %1214 = vmatpush1.msra.mxu0 %v1145
        %1215 = vmatprep.subr.mxu0 0.0
        %1216 = vmatpush1.msra.mxu0 %v1149
        %1217 = vmatprep.subr.mxu0 0.0
        %1218 = vmatpush1.msra.mxu0 %v1151
        %1219 = vmatprep.subr.mxu0 0.0
        %1220 = vmatpush1.msra.mxu0 %v1155
        %1221 = vmatprep.subr.mxu0 0.0
        %1222 = vmatpush1.msra.mxu0 %v1157
        %1223 = vmatprep.subr.mxu0 0.0
        %1224 = vmatpush1.msra.mxu0 %v1161
        %1225 = vmatprep.subr.mxu0 0.0
        %1226 = vmatpush1.msra.mxu0 %v1163
        %1227 = vmatprep.subr.mxu0 0.0
        %1228 = vmatpush1.msra.mxu0 %v1167
        %1229 = vmatprep.subr.mxu0 0.0
        %1230 = vmatpush1.msra.mxu0 %v1169
        %1231 = vmatprep.subr.mxu0 0.0
        %1232 = vmatpush1.msra.mxu0 %v1173
        %1233 = vmatprep.subr.mxu0 0.0
        %1234 = vmatpush1.msra.mxu0 %v1175
        %1235 = vmatprep.subr.mxu0 0.0
        %1236 = vmatpush1.msra.mxu0 %v1179
        %1237 = vmatprep.subr.mxu0 0.0
        %1238 = vmatpush1.msra.mxu0 %v1181
        %1239 = vmatprep.subr.mxu0 0.0
        %1240 = vmatpush1.msra.mxu0 %v1185
        %1241 = vmatprep.subr.mxu0 0.0
        %1242 = vmatpush1.msra.mxu0 %v1187
        %1243 = vmatprep.subr.mxu0 0.0
        %1244 = vmatpush1.msra.mxu0 0.0
        %1245 = vmatprep.subr.mxu0 0.0
        %1246 = vmatpush1.msra.mxu0 0.0
        %1247 = vmatprep.subr.mxu0 0.0
        %1248 = vmatpush1.msra.mxu0 0.0
        %1249 = vmatprep.subr.mxu0 0.0
        %1250 = vmatpush1.msra.mxu0 0.0
        %1251 = vmatprep.subr.mxu0 0.0
        %1252 = vmatpush1.msra.mxu0 0.0
        %1253 = vmatprep.subr.mxu0 0.0
        %1254 = vmatpush1.msra.mxu0 0.0
        %1255 = vmatprep.subr.mxu0 0.0
        %1256 = vmatpush1.msra.mxu0 0.0
        %1257 = vmatprep.subr.mxu0 0.0
        %1258 = vmatpush1.msra.mxu0 0.0
        %1259 = vmatprep.subr.mxu0 0.0
        %1260 = vmatpush1.msra.mxu0 0.0
        %1261 = vmatprep.subr.mxu0 0.0
        %1262 = vmatpush1.msra.mxu0 0.0
        %1263 = vmatprep.mubr.f32.mxu0 %v1197
        %1264 = vmatmul.mubr.f32.gmra.mrb[0].mxu0 %v1112
        %v1265 = vpop.f32.mrb[0].mxu0
        %v1266 = vadd.f32 %v1194, %v1265
        %v1267 = vpop.f32.mrb[0].mxu0
        %1268 = vdwg.mxu0
        %vm1269 = vcmask 130048
        %1270 = vst.msk [vmem:[%s415] sm:$0xff] %vm1269, %v1266
        %s1271 = sand.u32 %s267, 1
        %s1272 = scalar_lea.sflag [#allocation4], %s1271
        %s1273 = sand.u32 %s267, 1
        %s1274 = smul.addr %s1273, 8
        %s1275 = scalar_lea.vmem [#allocation10], %s1274
        // Predicated region
        $region81: #{tpu_custom_call.1} parent=63 // pred_check
          %p1276 = pneg %p277
        $region82: #{tpu_custom_call.1} parent=63 // pred_check_branch
          %1278 = sbr.rel (%p1276) target = $region84
        $region83: #{tpu_custom_call.1} parent=63 // pred_region
          %s1280 = ssub.s32 128, 128
          %1281 = vsyncadd %s1272, %s1280
          %s1282 = smul.addr %s28, 128
          %s1283 = scalar_lea.hbm %s11, %s1282
          %s1285 = sshll.u32 %s1275, 4
          %s1286 = int_to_ptr.vmem [resolvable:$true] %s1285
          %1288 = dma.vmem_to_hbm [thread:$0]  %s1286, 128, %s1283, %s1272
        $region84: #{tpu_custom_call.1} parent=63 // pred_fallthru
          _
      $region64: #{tpu_custom_call.1} parent=5 // pred_fallthru
        _
      %p1289 = scmp.le.s32.totalorder 2, %s23
      // Predicated region
      $region85: #{tpu_custom_call.1} parent=5 // pred_check
        %p1290 = pneg %p1289
      $region86: #{tpu_custom_call.1} parent=5 // pred_check_branch
        %1292 = sbr.rel (%p1290) target = $region88
      $region87: #{tpu_custom_call.1} parent=5 // pred_region
        %s1293 = ssub.s32 %s23, 2
        // Predicated region
        $region89: #{tpu_custom_call.1} parent=87 // pred_check
          %p1294 = pneg %p283
        $region90: #{tpu_custom_call.1} parent=87 // pred_check_branch
          %1296 = sbr.rel (%p1294) target = $region92
        $region91: #{tpu_custom_call.1} parent=87 // pred_region
          %s1297 = sand.u32 %s268, 1
          %s1298 = scalar_lea.sflag [#allocation4], %s1297
          %s1299 = sand.u32 %s268, 1
          %s1300 = smul.addr %s1299, 8
          %s1301 = scalar_lea.vmem [#allocation10], %s1300
          %1302 = dma.done %s1298, 128
        $region92: #{tpu_custom_call.1} parent=87 // pred_fallthru
          _
      $region88: #{tpu_custom_call.1} parent=5 // pred_fallthru
        _
    $region6: #{tpu_custom_call.1} parent=1 // loop_footer
      %s27 = sadd.s32 1, %s23
    $region7: #{tpu_custom_call.1} parent=1 // loop_footer_branch
      %22 = sbr.rel target = $region3
    $region8: #{tpu_custom_call.1} parent=1 // loop_exit
      _
    %1303 = vsyncpa [#allocation3], 1
    %s1304 = scalar_lea.sflag [#allocation3], 1
    %1305 = vsyncpa %s1304, 1
    %1306 = vsyncpa [#allocation6], 1
    %1307 = vsyncpa [#allocation9], 1
    %1308 = vsyncpa [#allocation4], 1
    %s1309 = scalar_lea.sflag [#allocation4], 1
    %1310 = vsyncpa %s1309, 1

</llo_original>
